<compile_context>
chip_gen: v7x
topology: tpu7x:2x2x1
jax: 0.10.0
libtpu: 0.0.40
codegen_flags: <defaults>
</compile_context>

<pallas_src>
import jax
import jax.numpy as jnp
from jax.experimental import pallas as pl
from jax.experimental.pallas import tpu as pltpu


# ------------------------------- helpers ----------------------------------- #
def _round_up(n, m):
    return ((n + m - 1) // m) * m


def _sublane_multiple(dtype):
    # Min sublane tile: 8 for 4-byte, 16 for 2-byte, 32 for 1-byte dtypes.
    return 8 * (4 // jnp.dtype(dtype).itemsize)


def _vmem_capacity_bytes():
    try:
        return int(pltpu.get_tpu_info().vmem_capacity_bytes)
    except Exception:
        return 64 * 1024 * 1024  # most conservative generation (v7x: 64 MiB per TensorCore)


def _vmem_limit(cap, needed_bytes):
    needed = int(1.3 * needed_bytes) + (4 << 20)
    return int(min(max(needed, 32 << 20), int(0.75 * cap)))


def _pick_edge_tile(e_pad, per_lane_bytes, max_tile, vmem_budget):
    """Largest 128-multiple divisor of e_pad that fits max_tile and the VMEM budget."""
    m = e_pad // 128
    best = 128
    for d in range(1, m + 1):
        if m % d:
            continue
        te = 128 * d
        if te <= max_tile and te * per_lane_bytes <= vmem_budget:
            best = te
    return best


# ----------------------------- Pallas kernels ------------------------------ #
def _taps_dot(w_ref, b_ref, f0, f1, f2, f3, f4, out_dtype):
    """Symmetric (order-invariant) functions + (1,5) conv as 5 accumulating MXU dots.

    No concatenate: taps stay in vregs and feed the MXU directly; f32 accumulation.
    """
    g = (f0, f1 + f3, f2 + f4, jnp.abs(f1 - f3), jnp.abs(f2 - f4))
    acc = jnp.dot(w_ref[0], g[0], preferred_element_type=jnp.float32)
    for t in range(1, 5):
        acc += jnp.dot(w_ref[t], g[t], preferred_element_type=jnp.float32)
    acc += b_ref[...].astype(jnp.float32)  # (C_out_pad, 1) broadcasts over the edge lanes
    return acc.astype(out_dtype)


def _mesh_conv_gather_kernel(gi_ref, x_ref, w_ref, b_ref, o_ref):
    """In-kernel neighbor gather path.

    gi_ref: (1, 5, TE) int32     neighbor indices into the padded slab (0 = zero pad column)
    x_ref:  (1, C_pad, E1_pad)   per-batch feature slab, resident across edge tiles
    w_ref:  (5, C_out_pad, C_pad) per-tap conv weights
    b_ref:  (C_out_pad, 1) f32   conv bias
    o_ref:  (1, C_out_pad, TE)   lane-dense output tile (already NCHW)
    """
    c_pad = x_ref.shape[1]
    te = gi_ref.shape[2]
    x = x_ref[0]  # (C_pad, E1_pad)

    def tap(t):
        idx = jnp.broadcast_to(gi_ref[0, t : t + 1, :], (c_pad, te))
        return jnp.take_along_axis(x, idx, axis=1, mode="promise_in_bounds")

    o_ref[0] = _taps_dot(w_ref, b_ref, tap(0), tap(1), tap(2), tap(3), tap(4), o_ref.dtype)


def _mesh_conv_pregathered_kernel(f_ref, w_ref, b_ref, o_ref):
    """Fallback path: features were gathered in the JAX glue.

    f_ref: (1, 5, C_pad, TE), w_ref: (5, C_out_pad, C_pad), b_ref: (C_out_pad, 1),
    o_ref: (1, C_out_pad, TE)
    """
    o_ref[0] = _taps_dot(
        w_ref, b_ref,
        f_ref[0, 0], f_ref[0, 1], f_ref[0, 2], f_ref[0, 3], f_ref[0, 4],
        o_ref.dtype,
    )


# --------------------------- pallas_call wrappers --------------------------- #
def _compiler_params(vmem_limit):
    # Both grid axes are "parallel": v7x's 2 TensorCores can shard batch AND edge tiles,
    # so a single-mesh (B=1) call still load-balances across cores when n_tiles > 1.
    return pltpu.CompilerParams(
        dimension_semantics=("parallel", "parallel"),
        vmem_limit_bytes=int(vmem_limit),
    )


def _cost_estimate(B, E_pad, C_out_pad, C_pad, in_bytes, out_bytes):
    return pl.CostEstimate(
        flops=int(2 * B * E_pad * C_out_pad * 5 * C_pad),
        transcendentals=0,
        bytes_accessed=int(in_bytes + out_bytes),
    )


def _mesh_conv_call_gather(gi, xp, w, b, out_dtype, te, vmem_limit):
    B, _, E_pad = gi.shape
    _, C_pad, E1_pad = xp.shape
    _, C_out_pad, _ = w.shape
    assert E_pad % te == 0
    n_tiles = E_pad // te
    out_item = jnp.dtype(out_dtype).itemsize

    in_bytes = gi.size * 4 + xp.size * xp.dtype.itemsize + w.size * w.dtype.itemsize + b.size * 4
    out_bytes = B * C_out_pad * E_pad * out_item

    return pl.pallas_call(
        _mesh_conv_gather_kernel,
        out_shape=jax.ShapeDtypeStruct((B, C_out_pad, E_pad), out_dtype),
        grid_spec=pltpu.PrefetchScalarGridSpec(
            num_scalar_prefetch=0,
            grid=(B, n_tiles),
            in_specs=[
                pl.BlockSpec((1, 5, te), lambda bi, e: (bi, 0, e)),            # indices tile
                pl.BlockSpec((1, C_pad, E1_pad), lambda bi, e: (bi, 0, 0)),    # slab, resident
                pl.BlockSpec((5, C_out_pad, C_pad), lambda bi, e: (0, 0, 0)),  # weights
                pl.BlockSpec((C_out_pad, 1), lambda bi, e: (0, 0)),            # bias
            ],
            out_specs=pl.BlockSpec((1, C_out_pad, te), lambda bi, e: (bi, 0, e)),
        ),
        compiler_params=_compiler_params(vmem_limit),
        cost_estimate=_cost_estimate(B, E_pad, C_out_pad, C_pad, in_bytes, out_bytes),
    )(gi, xp, w, b)


def _mesh_conv_call_pregathered(f, w, b, out_dtype, te, vmem_limit):
    B, K, C_pad, E_pad = f.shape
    _, C_out_pad, _ = w.shape
    assert K == 5 and E_pad % te == 0
    n_tiles = E_pad // te
    out_item = jnp.dtype(out_dtype).itemsize

    in_bytes = f.size * f.dtype.itemsize + w.size * w.dtype.itemsize + b.size * 4
    out_bytes = B * C_out_pad * E_pad * out_item

    return pl.pallas_call(
        _mesh_conv_pregathered_kernel,
        out_shape=jax.ShapeDtypeStruct((B, C_out_pad, E_pad), out_dtype),
        grid_spec=pltpu.PrefetchScalarGridSpec(
            num_scalar_prefetch=0,
            grid=(B, n_tiles),
            in_specs=[
                pl.BlockSpec((1, 5, C_pad, te), lambda bi, e: (bi, 0, 0, e)),
                pl.BlockSpec((5, C_out_pad, C_pad), lambda bi, e: (0, 0, 0)),
                pl.BlockSpec((C_out_pad, 1), lambda bi, e: (0, 0)),
            ],
            out_specs=pl.BlockSpec((1, C_out_pad, te), lambda bi, e: (bi, 0, e)),
        ),
        compiler_params=_compiler_params(vmem_limit),
        cost_estimate=_cost_estimate(B, E_pad, C_out_pad, C_pad, in_bytes, out_bytes),
    )(f, w, b)


# ------------------------------- Glue (JAX) -------------------------------- #
class SimpleMesh:
    """Minimal stand-in for the MeshCNN mesh data structure."""

    def __init__(self, gemm_edges, edges_count):
        self.gemm_edges = gemm_edges      # (edges_count, 4), int, -1 = missing neighbor
        self.edges_count = edges_count


def build_gather_indices(meshes, E):
    """(B, E, 5) int32 indices into the padded slab [zero-col, x]; 0 = missing neighbor.

    Matches torch pad_gemm (self index prepended, rows padded with 0) followed by Gi + 1,
    kept in int32 end-to-end (no float round-trip).
    """
    rows = []
    for m in meshes:
        ge = jnp.asarray(m.gemm_edges, dtype=jnp.int32)                  # (ec, 4)
        self_idx = jnp.arange(m.edges_count, dtype=jnp.int32)[:, None]   # (ec, 1)
        g = jnp.concatenate([self_idx, ge], axis=1)                      # (ec, 5)
        g = jnp.pad(g, ((0, E - m.edges_count), (0, 0)))                 # pad rows with 0
        rows.append(g[None])
    return jnp.concatenate(rows, axis=0) + 1                             # -1 -> 0 (pad column)


def mesh_conv_forward(x, meshes, weight, bias, *, edge_tile=2048,
                      gather_in_kernel=True, use_bf16_mxu=False):
    """x: (B, C_in, E, 1), weight: (C_out, C_in, 1, 5), bias: (C_out,) -> (B, C_out, E, 1)."""
    x = x[..., 0]                                                        # (B, C_in, E)
    B, C_in, E = x.shape
    C_out, _, _, K = weight.shape
    assert K == 5

    out_dtype = x.dtype
    compute_dtype = jnp.bfloat16 if (use_bf16_mxu and x.dtype == jnp.float32) else x.dtype
    item = jnp.dtype(compute_dtype).itemsize
    out_item = jnp.dtype(out_dtype).itemsize

    # dtype-aware sublane padding for channels (8/16/32 for f32/bf16/int8) and output channels.
    C_pad = _round_up(C_in, _sublane_multiple(compute_dtype))
    C_out_pad = _round_up(C_out, _sublane_multiple(out_dtype))

    # Edges padded only to the lane size; the tile divides E_pad exactly (no padding waste).
    E_pad = _round_up(E, 128)
    E1_pad = _round_up(E + 1, 128)

    cap = _vmem_capacity_bytes()
    per_lane = 2 * (5 * 4 + 5 * C_pad * item + C_out_pad * out_item) + 10 * C_pad * 4
    te = _pick_edge_tile(E_pad, per_lane, max(128, edge_tile), int(0.4 * cap))

    # Per-tap conv weights (5, C_out_pad, C_pad) and f32 bias, zero-padded.
    w_tap = jnp.transpose(weight[:, :, 0, :], (2, 0, 1))                 # (5, C_out, C_in)
    w_tap = jnp.pad(w_tap, ((0, 0), (0, C_out_pad - C_out), (0, C_pad - C_in)))
    w_tap = w_tap.astype(compute_dtype)
    b2 = jnp.pad(bias.astype(jnp.float32), (0, C_out_pad - C_out)).reshape(C_out_pad, 1)

    # Gather indices (torch pad_gemm / index_select equivalent), int32 end-to-end.
    Gi = build_gather_indices(meshes, E)                                 # (B, E, 5) in [0, E]
    Gi = jnp.pad(Gi, ((0, 0), (0, E_pad - E), (0, 0)))                   # extra edges -> pad col
    Gi_t = jnp.transpose(Gi, (0, 2, 1)).astype(jnp.int32)                # (B, 5, E_pad)

    # Feature slab with the zero "missing neighbor" column prepended; channel/lane padded.
    xp = jnp.zeros((B, C_pad, E1_pad), compute_dtype)
    xp = xp.at[:, :C_in, 1 : E + 1].set(x.astype(compute_dtype))

    slab_bytes = 2 * C_pad * E1_pad * item                               # double-buffered slab
    use_gather = gather_in_kernel and slab_bytes <= int(0.4 * cap)

    if use_gather:
        block_bytes = (5 * te * 4 + C_pad * E1_pad * item
                       + 5 * C_out_pad * C_pad * item + C_out_pad * 4
                       + C_out_pad * te * out_item)
        vmem_limit = _vmem_limit(cap, 2 * block_bytes + 12 * C_pad * te * 4)
        out = _mesh_conv_call_gather(Gi_t, xp, w_tap, b2, out_dtype, te, vmem_limit)
    else:
        # Fallback: gather in the glue (5x-expanded slab through HBM).
        # TODO(synk): for slabs too big for VMEM, stream edge-sized slab chunks with manual
        # DMA (pl.ANY + make_async_copy) instead of falling back to the HBM-expanded gather.
        xb = jnp.broadcast_to(xp[:, None, :, :], (B, 5, C_pad, E1_pad))
        idx = jnp.broadcast_to(Gi_t[:, :, None, :], (B, 5, C_pad, E_pad))
        f = jnp.take_along_axis(xb, idx, axis=3)                         # (B, 5, C_pad, E_pad)
        block_bytes = (5 * C_pad * te * item + 5 * C_out_pad * C_pad * item
                       + C_out_pad * 4 + C_out_pad * te * out_item)
        vmem_limit = _vmem_limit(cap, 2 * block_bytes + 12 * C_pad * te * 4)
        out = _mesh_conv_call_pregathered(f, w_tap, b2, out_dtype, te, vmem_limit)

    return out[:, :C_out, :E, None].astype(out_dtype)                    # NCHW, no transpose


# ------------------------------ Reference ---------------------------------- #
def mesh_conv_reference(x, meshes, weight, bias):
    x = x[..., 0]
    B, C_in, E = x.shape
    Gi = build_gather_indices(meshes, E)                                 # (B, E, 5)
    xp = jnp.concatenate([jnp.zeros((B, C_in, 1), x.dtype), x], axis=2)  # (B, C_in, E+1)
    f = jax.vmap(lambda xb, gb: xb[:, gb])(xp, Gi)                       # (B, C_in, E, 5)
    g = jnp.stack(
        [
            f[..., 0],
            f[..., 1] + f[..., 3],
            f[..., 2] + f[..., 4],
            jnp.abs(f[..., 1] - f[..., 3]),
            jnp.abs(f[..., 2] - f[..., 4]),
        ],
        axis=3,
    )                                                                    # (B, C_in, E, 5)
    out = jnp.einsum("bcek,ock->boe", g, weight[:, :, 0, :]) + bias[None, :, None]
    return out[..., None]


# --------------------------------- Main ------------------------------------ #
if __name__ == "__main__":
    B, C_in, C_out, E, K = 2, 4, 8, 16, 5

    key = jax.random.PRNGKey(0)
    k_x, k_w, k_b, k_g0, k_g1 = jax.random.split(key, 5)

    x = jax.random.normal(k_x, (B, C_in, E, 1), dtype=jnp.float32)

    # Deterministic parameter init (Conv2d(C_in, C_out, kernel_size=(1, 5), bias=True)).
    fan_in = C_in * 1 * K
    bound = 1.0 / (fan_in ** 0.5)
    weight = jax.random.uniform(k_w, (C_out, C_in, 1, K), jnp.float32, -bound, bound)
    bias = jax.random.uniform(k_b, (C_out,), jnp.float32, -bound, bound)

    # Synthetic meshes: 4 one-ring neighbors per edge, with some -1 (missing) entries.
    ge0 = jax.random.randint(k_g0, (E, 4), -1, E)
    ge1 = jax.random.randint(k_g1, (E, 4), -1, E)
    meshes = [SimpleMesh(ge0, E), SimpleMesh(ge1, E)]

    ref = mesh_conv_reference(x, meshes, weight, bias)

    def _run(gather_in_kernel):
        out = jax.block_until_ready(
            mesh_conv_forward(x, meshes, weight, bias, gather_in_kernel=gather_in_kernel)
        )
        assert out.shape == (B, C_out, E, 1), out.shape
        assert out.dtype == x.dtype, out.dtype
        err = float(jnp.max(jnp.abs(out - ref)))
        assert jnp.allclose(out, ref, atol=1e-5, rtol=1e-5), err
        return out

    try:
        out = _run(gather_in_kernel=True)       # fused in-kernel gather (primary path)
    except Exception:
        # In-kernel lane gather may not lower on every TPU generation / jaxlib; the
        # pre-gathered path keeps the same kernel epilogue and is always available.
        out = _run(gather_in_kernel=False)

    print("KERNEL_OK")
</pallas_src>

<mosaic_0001>
module attributes {stable_mosaic.version = 11 : i64} {
  func.func @_mesh_conv_gather_kernel(%arg0: i32, %arg1: i32, %arg2: memref<1x5x128xi32, #tpu.memory_space<vmem>>, %arg3: memref<1x8x128xf32, #tpu.memory_space<vmem>>, %arg4: memref<5x8x8xf32, #tpu.memory_space<vmem>>, %arg5: memref<8x1xf32, #tpu.memory_space<vmem>>, %arg6: memref<1x8x128xf32, #tpu.memory_space<vmem>>) attributes {dimension_semantics = [#tpu.dimension_semantics<parallel>, #tpu.dimension_semantics<parallel>], iteration_bounds = array<i64: 2, 1>, scalar_prefetch = 0 : i64, scratch_operands = 0 : i64, tpu.core_type = #tpu.core_type<tc>, window_params = [{transform_indices = @transform_0, window_bounds = array<i64: 1, 5, 128>}, {transform_indices = @transform_1, window_bounds = array<i64: 1, 8, 128>}, {pipeline_mode = #tpu.pipeline_mode<synchronous>, transform_indices = @transform_2, window_bounds = array<i64: 5, 8, 8>}, {pipeline_mode = #tpu.pipeline_mode<synchronous>, transform_indices = @transform_3, window_bounds = array<i64: 8, 1>}, {transform_indices = @transform_4, window_bounds = array<i64: 1, 8, 128>}]} {
    %c0 = arith.constant 0 : index
    %c0_0 = arith.constant 0 : index
    %c0_1 = arith.constant 0 : index
    %0 = vector.load %arg3[%c0, %c0_0, %c0_1] : memref<1x8x128xf32, #tpu.memory_space<vmem>>, vector<1x8x128xf32>
    %1 = vector.shape_cast %0 : vector<1x8x128xf32> to vector<8x128xf32>
    %c0_2 = arith.constant 0 : index
    %c0_3 = arith.constant 0 : index
    %c0_4 = arith.constant 0 : index
    %2 = vector.load %arg2[%c0_2, %c0_3, %c0_4] : memref<1x5x128xi32, #tpu.memory_space<vmem>>, vector<1x1x128xi32>
    %3 = vector.shape_cast %2 : vector<1x1x128xi32> to vector<1x128xi32>
    %4 = vector.shape_cast %3 : vector<1x128xi32> to vector<1x128xi32>
    %5 = vector.broadcast %4 : vector<1x128xi32> to vector<8x128xi32>
    %6 = vector.shape_cast %5 : vector<8x128xi32> to vector<8x128x1xi32>
    %7 = vector.shape_cast %6 : vector<8x128x1xi32> to vector<8x128xi32>
    %8 = tpu.dynamic_gather %1[%7] in [1] : vector<8x128xf32>, vector<8x128xi32> -> vector<8x128xf32>
    %c0_5 = arith.constant 0 : index
    %c1 = arith.constant 1 : index
    %c0_6 = arith.constant 0 : index
    %9 = vector.load %arg2[%c0_5, %c1, %c0_6] : memref<1x5x128xi32, #tpu.memory_space<vmem>>, vector<1x1x128xi32>
    %10 = vector.shape_cast %9 : vector<1x1x128xi32> to vector<1x128xi32>
    %11 = vector.shape_cast %10 : vector<1x128xi32> to vector<1x128xi32>
    %12 = vector.broadcast %11 : vector<1x128xi32> to vector<8x128xi32>
    %13 = vector.shape_cast %12 : vector<8x128xi32> to vector<8x128x1xi32>
    %14 = vector.shape_cast %13 : vector<8x128x1xi32> to vector<8x128xi32>
    %15 = tpu.dynamic_gather %1[%14] in [1] : vector<8x128xf32>, vector<8x128xi32> -> vector<8x128xf32>
    %c0_7 = arith.constant 0 : index
    %c2 = arith.constant 2 : index
    %c0_8 = arith.constant 0 : index
    %16 = vector.load %arg2[%c0_7, %c2, %c0_8] : memref<1x5x128xi32, #tpu.memory_space<vmem>>, vector<1x1x128xi32>
    %17 = vector.shape_cast %16 : vector<1x1x128xi32> to vector<1x128xi32>
    %18 = vector.shape_cast %17 : vector<1x128xi32> to vector<1x128xi32>
    %19 = vector.broadcast %18 : vector<1x128xi32> to vector<8x128xi32>
    %20 = vector.shape_cast %19 : vector<8x128xi32> to vector<8x128x1xi32>
    %21 = vector.shape_cast %20 : vector<8x128x1xi32> to vector<8x128xi32>
    %22 = tpu.dynamic_gather %1[%21] in [1] : vector<8x128xf32>, vector<8x128xi32> -> vector<8x128xf32>
    %c0_9 = arith.constant 0 : index
    %c3 = arith.constant 3 : index
    %c0_10 = arith.constant 0 : index
    %23 = vector.load %arg2[%c0_9, %c3, %c0_10] : memref<1x5x128xi32, #tpu.memory_space<vmem>>, vector<1x1x128xi32>
    %24 = vector.shape_cast %23 : vector<1x1x128xi32> to vector<1x128xi32>
    %25 = vector.shape_cast %24 : vector<1x128xi32> to vector<1x128xi32>
    %26 = vector.broadcast %25 : vector<1x128xi32> to vector<8x128xi32>
    %27 = vector.shape_cast %26 : vector<8x128xi32> to vector<8x128x1xi32>
    %28 = vector.shape_cast %27 : vector<8x128x1xi32> to vector<8x128xi32>
    %29 = tpu.dynamic_gather %1[%28] in [1] : vector<8x128xf32>, vector<8x128xi32> -> vector<8x128xf32>
    %c0_11 = arith.constant 0 : index
    %c4 = arith.constant 4 : index
    %c0_12 = arith.constant 0 : index
    %30 = vector.load %arg2[%c0_11, %c4, %c0_12] : memref<1x5x128xi32, #tpu.memory_space<vmem>>, vector<1x1x128xi32>
    %31 = vector.shape_cast %30 : vector<1x1x128xi32> to vector<1x128xi32>
    %32 = vector.shape_cast %31 : vector<1x128xi32> to vector<1x128xi32>
    %33 = vector.broadcast %32 : vector<1x128xi32> to vector<8x128xi32>
    %34 = vector.shape_cast %33 : vector<8x128xi32> to vector<8x128x1xi32>
    %35 = vector.shape_cast %34 : vector<8x128x1xi32> to vector<8x128xi32>
    %36 = tpu.dynamic_gather %1[%35] in [1] : vector<8x128xf32>, vector<8x128xi32> -> vector<8x128xf32>
    %37 = arith.addf %15, %29 : vector<8x128xf32>
    %38 = arith.addf %22, %36 : vector<8x128xf32>
    %39 = arith.subf %15, %29 : vector<8x128xf32>
    %40 = math.absf %39 : vector<8x128xf32>
    %41 = arith.subf %22, %36 : vector<8x128xf32>
    %42 = math.absf %41 : vector<8x128xf32>
    %c0_13 = arith.constant 0 : index
    %c0_14 = arith.constant 0 : index
    %c0_15 = arith.constant 0 : index
    %43 = vector.load %arg4[%c0_13, %c0_14, %c0_15] : memref<5x8x8xf32, #tpu.memory_space<vmem>>, vector<1x8x8xf32>
    %44 = vector.shape_cast %43 : vector<1x8x8xf32> to vector<8x8xf32>
    %cst = arith.constant dense<0.000000e+00> : vector<8x128xf32>
    %45 = tpu.matmul %44, %8, %cst {dimension_numbers = #tpu.dot_dimension_numbers<[1], [0], [0], [1], [0, 0, 1, 1], [], []>} : vector<8x8xf32>, vector<8x128xf32>, vector<8x128xf32> -> vector<8x128xf32>
    %c1_16 = arith.constant 1 : index
    %c0_17 = arith.constant 0 : index
    %c0_18 = arith.constant 0 : index
    %46 = vector.load %arg4[%c1_16, %c0_17, %c0_18] : memref<5x8x8xf32, #tpu.memory_space<vmem>>, vector<1x8x8xf32>
    %47 = vector.shape_cast %46 : vector<1x8x8xf32> to vector<8x8xf32>
    %cst_19 = arith.constant dense<0.000000e+00> : vector<8x128xf32>
    %48 = tpu.matmul %47, %37, %cst_19 {dimension_numbers = #tpu.dot_dimension_numbers<[1], [0], [0], [1], [0, 0, 1, 1], [], []>} : vector<8x8xf32>, vector<8x128xf32>, vector<8x128xf32> -> vector<8x128xf32>
    %49 = arith.addf %45, %48 : vector<8x128xf32>
    %c2_20 = arith.constant 2 : index
    %c0_21 = arith.constant 0 : index
    %c0_22 = arith.constant 0 : index
    %50 = vector.load %arg4[%c2_20, %c0_21, %c0_22] : memref<5x8x8xf32, #tpu.memory_space<vmem>>, vector<1x8x8xf32>
    %51 = vector.shape_cast %50 : vector<1x8x8xf32> to vector<8x8xf32>
    %cst_23 = arith.constant dense<0.000000e+00> : vector<8x128xf32>
    %52 = tpu.matmul %51, %38, %cst_23 {dimension_numbers = #tpu.dot_dimension_numbers<[1], [0], [0], [1], [0, 0, 1, 1], [], []>} : vector<8x8xf32>, vector<8x128xf32>, vector<8x128xf32> -> vector<8x128xf32>
    %53 = arith.addf %49, %52 : vector<8x128xf32>
    %c3_24 = arith.constant 3 : index
    %c0_25 = arith.constant 0 : index
    %c0_26 = arith.constant 0 : index
    %54 = vector.load %arg4[%c3_24, %c0_25, %c0_26] : memref<5x8x8xf32, #tpu.memory_space<vmem>>, vector<1x8x8xf32>
    %55 = vector.shape_cast %54 : vector<1x8x8xf32> to vector<8x8xf32>
    %cst_27 = arith.constant dense<0.000000e+00> : vector<8x128xf32>
    %56 = tpu.matmul %55, %40, %cst_27 {dimension_numbers = #tpu.dot_dimension_numbers<[1], [0], [0], [1], [0, 0, 1, 1], [], []>} : vector<8x8xf32>, vector<8x128xf32>, vector<8x128xf32> -> vector<8x128xf32>
    %57 = arith.addf %53, %56 : vector<8x128xf32>
    %c4_28 = arith.constant 4 : index
    %c0_29 = arith.constant 0 : index
    %c0_30 = arith.constant 0 : index
    %58 = vector.load %arg4[%c4_28, %c0_29, %c0_30] : memref<5x8x8xf32, #tpu.memory_space<vmem>>, vector<1x8x8xf32>
    %59 = vector.shape_cast %58 : vector<1x8x8xf32> to vector<8x8xf32>
    %cst_31 = arith.constant dense<0.000000e+00> : vector<8x128xf32>
    %60 = tpu.matmul %59, %42, %cst_31 {dimension_numbers = #tpu.dot_dimension_numbers<[1], [0], [0], [1], [0, 0, 1, 1], [], []>} : vector<8x8xf32>, vector<8x128xf32>, vector<8x128xf32> -> vector<8x128xf32>
    %61 = arith.addf %57, %60 : vector<8x128xf32>
    %c0_32 = arith.constant 0 : index
    %c0_33 = arith.constant 0 : index
    %62 = vector.load %arg5[%c0_32, %c0_33] : memref<8x1xf32, #tpu.memory_space<vmem>>, vector<8x1xf32>
    %63 = vector.broadcast %62 : vector<8x1xf32> to vector<8x128xf32>
    %64 = arith.addf %61, %63 : vector<8x128xf32>
    %c0_34 = arith.constant 0 : index
    %c0_35 = arith.constant 0 : index
    %c0_36 = arith.constant 0 : index
    %65 = vector.load %arg6[%c0_34, %c0_35, %c0_36] : memref<1x8x128xf32, #tpu.memory_space<vmem>>, vector<1x8x128xf32>
    %66 = vector.shape_cast %65 : vector<1x8x128xf32> to vector<8x128xf32>
    %67 = vector.shape_cast %64 : vector<8x128xf32> to vector<1x8x128xf32>
    tpu.vector_store %arg6[%c0_34, %c0_35, %c0_36], %67 {strides = array<i32>} : memref<1x8x128xf32, #tpu.memory_space<vmem>>, vector<1x8x128xf32>,
    return
  }
  func.func @transform_0(%arg0: i32, %arg1: i32) -> (i32, i32, i32) {
    %c0_i32 = arith.constant 0 : i32
    %c0_i32_0 = arith.constant 0 : i32
    return %arg0, %c0_i32, %arg1 : i32, i32, i32
  }
  func.func @transform_1(%arg0: i32, %arg1: i32) -> (i32, i32, i32) {
    %c0_i32 = arith.constant 0 : i32
    %c0_i32_0 = arith.constant 0 : i32
    %c0_i32_1 = arith.constant 0 : i32
    return %arg0, %c0_i32, %c0_i32_0 : i32, i32, i32
  }
  func.func @transform_2(%arg0: i32, %arg1: i32) -> (i32, i32, i32) {
    %c0_i32 = arith.constant 0 : i32
    %c0_i32_0 = arith.constant 0 : i32
    %c0_i32_1 = arith.constant 0 : i32
    %c0_i32_2 = arith.constant 0 : i32
    return %c0_i32, %c0_i32_0, %c0_i32_1 : i32, i32, i32
  }
  func.func @transform_3(%arg0: i32, %arg1: i32) -> (i32, i32) {
    %c0_i32 = arith.constant 0 : i32
    %c0_i32_0 = arith.constant 0 : i32
    %c0_i32_1 = arith.constant 0 : i32
    return %c0_i32, %c0_i32_0 : i32, i32
  }
  func.func @transform_4(%arg0: i32, %arg1: i32) -> (i32, i32, i32) {
    %c0_i32 = arith.constant 0 : i32
    %c0_i32_0 = arith.constant 0 : i32
    return %arg0, %c0_i32, %arg1 : i32, i32, i32
  }
}

module attributes {stable_mosaic.version = 11 : i64} {
  func.func @_mesh_conv_pregathered_kernel(%arg0: i32, %arg1: i32, %arg2: memref<1x5x8x128xf32, #tpu.memory_space<vmem>>, %arg3: memref<5x8x8xf32, #tpu.memory_space<vmem>>, %arg4: memref<8x1xf32, #tpu.memory_space<vmem>>, %arg5: memref<1x8x128xf32, #tpu.memory_space<vmem>>) attributes {dimension_semantics = [#tpu.dimension_semantics<parallel>, #tpu.dimension_semantics<parallel>], iteration_bounds = array<i64: 2, 1>, scalar_prefetch = 0 : i64, scratch_operands = 0 : i64, tpu.core_type = #tpu.core_type<tc>, window_params = [{transform_indices = @transform_0, window_bounds = array<i64: 1, 5, 8, 128>}, {pipeline_mode = #tpu.pipeline_mode<synchronous>, transform_indices = @transform_1, window_bounds = array<i64: 5, 8, 8>}, {pipeline_mode = #tpu.pipeline_mode<synchronous>, transform_indices = @transform_2, window_bounds = array<i64: 8, 1>}, {transform_indices = @transform_3, window_bounds = array<i64: 1, 8, 128>}]} {
    %c0 = arith.constant 0 : index
    %c0_0 = arith.constant 0 : index
    %c0_1 = arith.constant 0 : index
    %c0_2 = arith.constant 0 : index
    %0 = vector.load %arg2[%c0, %c0_0, %c0_1, %c0_2] : memref<1x5x8x128xf32, #tpu.memory_space<vmem>>, vector<1x1x8x128xf32>
    %1 = vector.shape_cast %0 : vector<1x1x8x128xf32> to vector<8x128xf32>
    %c0_3 = arith.constant 0 : index
    %c1 = arith.constant 1 : index
    %c0_4 = arith.constant 0 : index
    %c0_5 = arith.constant 0 : index
    %2 = vector.load %arg2[%c0_3, %c1, %c0_4, %c0_5] : memref<1x5x8x128xf32, #tpu.memory_space<vmem>>, vector<1x1x8x128xf32>
    %3 = vector.shape_cast %2 : vector<1x1x8x128xf32> to vector<8x128xf32>
    %c0_6 = arith.constant 0 : index
    %c2 = arith.constant 2 : index
    %c0_7 = arith.constant 0 : index
    %c0_8 = arith.constant 0 : index
    %4 = vector.load %arg2[%c0_6, %c2, %c0_7, %c0_8] : memref<1x5x8x128xf32, #tpu.memory_space<vmem>>, vector<1x1x8x128xf32>
    %5 = vector.shape_cast %4 : vector<1x1x8x128xf32> to vector<8x128xf32>
    %c0_9 = arith.constant 0 : index
    %c3 = arith.constant 3 : index
    %c0_10 = arith.constant 0 : index
    %c0_11 = arith.constant 0 : index
    %6 = vector.load %arg2[%c0_9, %c3, %c0_10, %c0_11] : memref<1x5x8x128xf32, #tpu.memory_space<vmem>>, vector<1x1x8x128xf32>
    %7 = vector.shape_cast %6 : vector<1x1x8x128xf32> to vector<8x128xf32>
    %c0_12 = arith.constant 0 : index
    %c4 = arith.constant 4 : index
    %c0_13 = arith.constant 0 : index
    %c0_14 = arith.constant 0 : index
    %8 = vector.load %arg2[%c0_12, %c4, %c0_13, %c0_14] : memref<1x5x8x128xf32, #tpu.memory_space<vmem>>, vector<1x1x8x128xf32>
    %9 = vector.shape_cast %8 : vector<1x1x8x128xf32> to vector<8x128xf32>
    %10 = arith.addf %3, %7 : vector<8x128xf32>
    %11 = arith.addf %5, %9 : vector<8x128xf32>
    %12 = arith.subf %3, %7 : vector<8x128xf32>
    %13 = math.absf %12 : vector<8x128xf32>
    %14 = arith.subf %5, %9 : vector<8x128xf32>
    %15 = math.absf %14 : vector<8x128xf32>
    %c0_15 = arith.constant 0 : index
    %c0_16 = arith.constant 0 : index
    %c0_17 = arith.constant 0 : index
    %16 = vector.load %arg3[%c0_15, %c0_16, %c0_17] : memref<5x8x8xf32, #tpu.memory_space<vmem>>, vector<1x8x8xf32>
    %17 = vector.shape_cast %16 : vector<1x8x8xf32> to vector<8x8xf32>
    %cst = arith.constant dense<0.000000e+00> : vector<8x128xf32>
    %18 = tpu.matmul %17, %1, %cst {dimension_numbers = #tpu.dot_dimension_numbers<[1], [0], [0], [1], [0, 0, 1, 1], [], []>} : vector<8x8xf32>, vector<8x128xf32>, vector<8x128xf32> -> vector<8x128xf32>
    %c1_18 = arith.constant 1 : index
    %c0_19 = arith.constant 0 : index
    %c0_20 = arith.constant 0 : index
    %19 = vector.load %arg3[%c1_18, %c0_19, %c0_20] : memref<5x8x8xf32, #tpu.memory_space<vmem>>, vector<1x8x8xf32>
    %20 = vector.shape_cast %19 : vector<1x8x8xf32> to vector<8x8xf32>
    %cst_21 = arith.constant dense<0.000000e+00> : vector<8x128xf32>
    %21 = tpu.matmul %20, %10, %cst_21 {dimension_numbers = #tpu.dot_dimension_numbers<[1], [0], [0], [1], [0, 0, 1, 1], [], []>} : vector<8x8xf32>, vector<8x128xf32>, vector<8x128xf32> -> vector<8x128xf32>
    %22 = arith.addf %18, %21 : vector<8x128xf32>
    %c2_22 = arith.constant 2 : index
    %c0_23 = arith.constant 0 : index
    %c0_24 = arith.constant 0 : index
    %23 = vector.load %arg3[%c2_22, %c0_23, %c0_24] : memref<5x8x8xf32, #tpu.memory_space<vmem>>, vector<1x8x8xf32>
    %24 = vector.shape_cast %23 : vector<1x8x8xf32> to vector<8x8xf32>
    %cst_25 = arith.constant dense<0.000000e+00> : vector<8x128xf32>
    %25 = tpu.matmul %24, %11, %cst_25 {dimension_numbers = #tpu.dot_dimension_numbers<[1], [0], [0], [1], [0, 0, 1, 1], [], []>} : vector<8x8xf32>, vector<8x128xf32>, vector<8x128xf32> -> vector<8x128xf32>
    %26 = arith.addf %22, %25 : vector<8x128xf32>
    %c3_26 = arith.constant 3 : index
    %c0_27 = arith.constant 0 : index
    %c0_28 = arith.constant 0 : index
    %27 = vector.load %arg3[%c3_26, %c0_27, %c0_28] : memref<5x8x8xf32, #tpu.memory_space<vmem>>, vector<1x8x8xf32>
    %28 = vector.shape_cast %27 : vector<1x8x8xf32> to vector<8x8xf32>
    %cst_29 = arith.constant dense<0.000000e+00> : vector<8x128xf32>
    %29 = tpu.matmul %28, %13, %cst_29 {dimension_numbers = #tpu.dot_dimension_numbers<[1], [0], [0], [1], [0, 0, 1, 1], [], []>} : vector<8x8xf32>, vector<8x128xf32>, vector<8x128xf32> -> vector<8x128xf32>
    %30 = arith.addf %26, %29 : vector<8x128xf32>
    %c4_30 = arith.constant 4 : index
    %c0_31 = arith.constant 0 : index
    %c0_32 = arith.constant 0 : index
    %31 = vector.load %arg3[%c4_30, %c0_31, %c0_32] : memref<5x8x8xf32, #tpu.memory_space<vmem>>, vector<1x8x8xf32>
    %32 = vector.shape_cast %31 : vector<1x8x8xf32> to vector<8x8xf32>
    %cst_33 = arith.constant dense<0.000000e+00> : vector<8x128xf32>
    %33 = tpu.matmul %32, %15, %cst_33 {dimension_numbers = #tpu.dot_dimension_numbers<[1], [0], [0], [1], [0, 0, 1, 1], [], []>} : vector<8x8xf32>, vector<8x128xf32>, vector<8x128xf32> -> vector<8x128xf32>
    %34 = arith.addf %30, %33 : vector<8x128xf32>
    %c0_34 = arith.constant 0 : index
    %c0_35 = arith.constant 0 : index
    %35 = vector.load %arg4[%c0_34, %c0_35] : memref<8x1xf32, #tpu.memory_space<vmem>>, vector<8x1xf32>
    %36 = vector.broadcast %35 : vector<8x1xf32> to vector<8x128xf32>
    %37 = arith.addf %34, %36 : vector<8x128xf32>
    %c0_36 = arith.constant 0 : index
    %c0_37 = arith.constant 0 : index
    %c0_38 = arith.constant 0 : index
    %38 = vector.load %arg5[%c0_36, %c0_37, %c0_38] : memref<1x8x128xf32, #tpu.memory_space<vmem>>, vector<1x8x128xf32>
    %39 = vector.shape_cast %38 : vector<1x8x128xf32> to vector<8x128xf32>
    %40 = vector.shape_cast %37 : vector<8x128xf32> to vector<1x8x128xf32>
    tpu.vector_store %arg5[%c0_36, %c0_37, %c0_38], %40 {strides = array<i32>} : memref<1x8x128xf32, #tpu.memory_space<vmem>>, vector<1x8x128xf32>,
    return
  }
  func.func @transform_0(%arg0: i32, %arg1: i32) -> (i32, i32, i32, i32) {
    %c0_i32 = arith.constant 0 : i32
    %c0_i32_0 = arith.constant 0 : i32
    %c0_i32_1 = arith.constant 0 : i32
    return %arg0, %c0_i32, %c0_i32_0, %arg1 : i32, i32, i32, i32
  }
  func.func @transform_1(%arg0: i32, %arg1: i32) -> (i32, i32, i32) {
    %c0_i32 = arith.constant 0 : i32
    %c0_i32_0 = arith.constant 0 : i32
    %c0_i32_1 = arith.constant 0 : i32
    %c0_i32_2 = arith.constant 0 : i32
    return %c0_i32, %c0_i32_0, %c0_i32_1 : i32, i32, i32
  }
  func.func @transform_2(%arg0: i32, %arg1: i32) -> (i32, i32) {
    %c0_i32 = arith.constant 0 : i32
    %c0_i32_0 = arith.constant 0 : i32
    %c0_i32_1 = arith.constant 0 : i32
    return %c0_i32, %c0_i32_0 : i32, i32
  }
  func.func @transform_3(%arg0: i32, %arg1: i32) -> (i32, i32, i32) {
    %c0_i32 = arith.constant 0 : i32
    %c0_i32_0 = arith.constant 0 : i32
    return %arg0, %c0_i32, %arg1 : i32, i32, i32
  }
}

</mosaic_0001>

<llo_original>
// kernel: tpu_custom_call.1
$region0: #{tpu_custom_call.1}
  #allocation0 [shape = 'u32[]', space=smem, size = 0x4, offset = 0x4, fixed_abs, tag = 'smem constant byte address 0x4 - core index']
  #allocation1 [shape = 'u32[144,128]{1,0:T(1,128)}', space=vmem, size = 0x12000, scoped, tag = 'internal scratch']
  %s0 = inlined_call_operand.vmem [shape: s32[2,5,128], index: 0, kind: input, shape index: {}]
  %s1 = inlined_call_operand.hbm [shape: f32[2,8,128], index: 1, kind: input, shape index: {}]
  %s2 = inlined_call_operand.vmem [shape: f32[5,8,8], index: 2, kind: input, shape index: {}]
  %s3 = inlined_call_operand.vmem [shape: f32[8,1], index: 3, kind: input, shape index: {}]
  %s4 = inlined_call_operand.hbm [shape: f32[2,8,128], index: 4, kind: output, shape index: {}]
  %s5 = sld [smem:[#allocation0]]
  $region53: #{tpu_custom_call.1} parent=0
    _
  %s7 = ssub.s32 1, %s5
  %s8 = scalar_select 0, %s7, %s5
  $region1: #{tpu_custom_call.1} parent=0
    #allocation2 [shape = 'u8[8192]{0}', space=vmem, size = 0x2000, scoped, tag = 'input window, operand 1']
    #allocation3 [shape = 's32[2]{0}', space=sflag, size = 0x8, scoped, tag = 'scoped memory for tpu_custom_call.1']
    #allocation4 [shape = 's32[2]{0}', space=sflag, size = 0x8, scoped, tag = 'scoped memory for tpu_custom_call.1']
    #allocation5 [shape = 'u8[8192]{0}', space=vmem, size = 0x2000, scoped, tag = 'output window, operand 0']
    %9 = vsyncpa [#allocation3], 0
    %s10 = scalar_lea.sflag [#allocation3], 1
    %11 = vsyncpa %s10, 0
    %12 = vsyncpa [#allocation4], 0
    %s13 = scalar_lea.sflag [#allocation4], 1
    %14 = vsyncpa %s13, 0
    loop: start=0, step=1, limit=4
    $region2: #{tpu_custom_call.1} parent=1 // loop_pre_header
      _
    $region3: #{tpu_custom_call.1} parent=1 // loop_header
      %s16 = sphi 0, %s20
      %p17 = scmp.ge.s32.totalorder %s16, 4
      %s23 = sphi 0, %s35
      %s24 = sphi 0, %s31
      %s25 = sphi 0, %s23
      %s26 = sphi 0, %s24
      %s27 = sphi 0, %s25
      %s28 = sphi 0, %s26
      %s40 = sphi 0, %s42
      %s43 = sphi 0, %s40
      %s44 = sphi 0, %s43
      %s60 = sphi 0, %s44
      %s66 = sphi 0, %s68
      %s69 = sphi 0, %s66
      %s70 = sphi 0, %s69
      %s86 = sphi 0, %s70
      %s90 = sphi 0, %s90
      %s92 = sphi 0, %s90
      %s93 = sphi 0, %s92
      %s107 = sphi 0, %s93
      %s111 = sphi 0, %s111
      %s113 = sphi 0, %s111
      %s114 = sphi 0, %s113
      %s128 = sphi 0, %s114
      %s136 = sphi 0, %s138
      %s139 = sphi 0, %s136
      %s140 = sphi 0, %s139
      %s156 = sphi 0, %s140
    $region4: #{tpu_custom_call.1} parent=1 // loop_header_branch
      %19 = sbr.rel (%p17) target = $region8
    $region5: #{tpu_custom_call.1} parent=1 // loop_body
      %s21 = ssub.s32 %s16, 1
      %s22 = ssub.s32 %s16, 2
      %s29 = sadd.s32 1, %s24
      %p30 = scmp.ge.s32.totalorder %s29, 1
      %s31 = scalar_select %p30, 0, %s29
      %s32 = sadd.s32 1, %s23
      %s33 = scalar_select %p30, %s32, %s23
      %p34 = scmp.ge.s32.totalorder %s33, 2
      %s35 = scalar_select %p34, 0, %s33
      %s36 = ssub.s32 %s23, %s35
      %s37 = ssub.s32 %s24, %s31
      %s38 = sor.u32 %s36, %s37
      %p39 = scmp.eq.s32.totalorder %s38, 0
      %s41 = sadd.s32 %s40, 1
      %s42 = scalar_select %p39, %s40, %s41
      %p45 = pneg %p39
      %p46 = scmp.eq.s32.totalorder %s16, 1
      %p47 = por %p45, %p46
      %p48 = scmp.ne.s32.totalorder %s40, %s43
      %p49 = scmp.eq.s32.totalorder %s16, 0
      %p50 = por %p48, %p49
      %p51 = scmp.ne.s32.totalorder %s40, %s43
      %p52 = scmp.eq.s32.totalorder %s21, 1
      %p53 = por %p51, %p52
      %p54 = scmp.ne.s32.totalorder %s43, %s44
      %p55 = scmp.eq.s32.totalorder %s21, 0
      %p56 = por %p54, %p55
      %p57 = scmp.ne.s32.totalorder %s43, %s44
      %p58 = scmp.eq.s32.totalorder %s22, 1
      %p59 = por %p57, %p58
      %p61 = scmp.ne.s32.totalorder %s44, %s60
      %p62 = scmp.eq.s32.totalorder %s22, 0
      %p63 = por %p61, %p62
      %s64 = ssub.s32 %s23, %s35
      %p65 = scmp.eq.s32.totalorder %s64, 0
      %s67 = sadd.s32 %s66, 1
      %s68 = scalar_select %p65, %s66, %s67
      %p71 = pneg %p65
      %p72 = scmp.eq.s32.totalorder %s16, 1
      %p73 = por %p71, %p72
      %p74 = scmp.ne.s32.totalorder %s66, %s69
      %p75 = scmp.eq.s32.totalorder %s16, 0
      %p76 = por %p74, %p75
      %p77 = scmp.ne.s32.totalorder %s66, %s69
      %p78 = scmp.eq.s32.totalorder %s21, 1
      %p79 = por %p77, %p78
      %p80 = scmp.ne.s32.totalorder %s69, %s70
      %p81 = scmp.eq.s32.totalorder %s21, 0
      %p82 = por %p80, %p81
      %p83 = scmp.ne.s32.totalorder %s69, %s70
      %p84 = scmp.eq.s32.totalorder %s22, 1
      %p85 = por %p83, %p84
      %p87 = scmp.ne.s32.totalorder %s70, %s86
      %p88 = scmp.eq.s32.totalorder %s22, 0
      %p89 = por %p87, %p88
      %s91 = sadd.s32 %s90, 1
      %p94 = scmp.eq.s32.totalorder %s16, 1
      %p95 = scmp.ne.s32.totalorder %s90, %s92
      %p96 = scmp.eq.s32.totalorder %s16, 0
      %p97 = por %p95, %p96
      %p98 = scmp.ne.s32.totalorder %s90, %s92
      %p99 = scmp.eq.s32.totalorder %s21, 1
      %p100 = por %p98, %p99
      %p101 = scmp.ne.s32.totalorder %s92, %s93
      %p102 = scmp.eq.s32.totalorder %s21, 0
      %p103 = por %p101, %p102
      %p104 = scmp.ne.s32.totalorder %s92, %s93
      %p105 = scmp.eq.s32.totalorder %s22, 1
      %p106 = por %p104, %p105
      %p108 = scmp.ne.s32.totalorder %s93, %s107
      %p109 = scmp.eq.s32.totalorder %s22, 0
      %p110 = por %p108, %p109
      %s112 = sadd.s32 %s111, 1
      %p115 = scmp.eq.s32.totalorder %s16, 1
      %p116 = scmp.ne.s32.totalorder %s111, %s113
      %p117 = scmp.eq.s32.totalorder %s16, 0
      %p118 = por %p116, %p117
      %p119 = scmp.ne.s32.totalorder %s111, %s113
      %p120 = scmp.eq.s32.totalorder %s21, 1
      %p121 = por %p119, %p120
      %p122 = scmp.ne.s32.totalorder %s113, %s114
      %p123 = scmp.eq.s32.totalorder %s21, 0
      %p124 = por %p122, %p123
      %p125 = scmp.ne.s32.totalorder %s113, %s114
      %p126 = scmp.eq.s32.totalorder %s22, 1
      %p127 = por %p125, %p126
      %p129 = scmp.ne.s32.totalorder %s114, %s128
      %p130 = scmp.eq.s32.totalorder %s22, 0
      %p131 = por %p129, %p130
      %s132 = ssub.s32 %s23, %s35
      %s133 = ssub.s32 %s24, %s31
      %s134 = sor.u32 %s132, %s133
      %p135 = scmp.eq.s32.totalorder %s134, 0
      %s137 = sadd.s32 %s136, 1
      %s138 = scalar_select %p135, %s136, %s137
      %p141 = pneg %p135
      %p142 = scmp.eq.s32.totalorder %s16, 1
      %p143 = por %p141, %p142
      %p144 = scmp.ne.s32.totalorder %s136, %s139
      %p145 = scmp.eq.s32.totalorder %s16, 0
      %p146 = por %p144, %p145
      %p147 = scmp.ne.s32.totalorder %s136, %s139
      %p148 = scmp.eq.s32.totalorder %s21, 1
      %p149 = por %p147, %p148
      %p150 = scmp.ne.s32.totalorder %s139, %s140
      %p151 = scmp.eq.s32.totalorder %s21, 0
      %p152 = por %p150, %p151
      %p153 = scmp.ne.s32.totalorder %s139, %s140
      %p154 = scmp.eq.s32.totalorder %s22, 1
      %p155 = por %p153, %p154
      %p157 = scmp.ne.s32.totalorder %s140, %s156
      %p158 = scmp.eq.s32.totalorder %s22, 0
      %p159 = por %p157, %p158
      %p160 = scmp.le.s32.totalorder 1, %s16
      %p161 = scmp.lt.s32.totalorder %s16, 3
      %p162 = pnand %p160, %p161
      %p163 = pneg %p162
      // Predicated region
      $region9: #{tpu_custom_call.1} parent=5 // pred_check
        _
      $region10: #{tpu_custom_call.1} parent=5 // pred_check_branch
        %165 = sbr.rel (%p162) target = $region12
      $region11: #{tpu_custom_call.1} parent=5 // pred_region
        %s166 = ssub.s32 %s16, 1
        // Predicated region
        $region13: #{tpu_custom_call.1} parent=11 // pred_check
          %p167 = pneg %p103
        $region14: #{tpu_custom_call.1} parent=11 // pred_check_branch
          %169 = sbr.rel (%p167) target = $region16
        $region15: #{tpu_custom_call.1} parent=11 // pred_region
          _
        $region16: #{tpu_custom_call.1} parent=11 // pred_fallthru
          _
        // Predicated region
        $region17: #{tpu_custom_call.1} parent=11 // pred_check
          %p170 = pneg %p124
        $region18: #{tpu_custom_call.1} parent=11 // pred_check_branch
          %172 = sbr.rel (%p170) target = $region20
        $region19: #{tpu_custom_call.1} parent=11 // pred_region
          _
        $region20: #{tpu_custom_call.1} parent=11 // pred_fallthru
          _
      $region12: #{tpu_custom_call.1} parent=5 // pred_fallthru
        _
      %p173 = scmp.lt.s32.totalorder %s16, 2
      // Predicated region
      $region21: #{tpu_custom_call.1} parent=5 // pred_check
        %p174 = pneg %p173
      $region22: #{tpu_custom_call.1} parent=5 // pred_check_branch
        %176 = sbr.rel (%p174) target = $region24
      $region23: #{tpu_custom_call.1} parent=5 // pred_region
        // Predicated region
        $region25: #{tpu_custom_call.1} parent=23 // pred_check
          %p177 = pneg %p50
        $region26: #{tpu_custom_call.1} parent=23 // pred_check_branch
          %179 = sbr.rel (%p177) target = $region28
        $region27: #{tpu_custom_call.1} parent=23 // pred_region
          %p180 = scmp.lt.s32.totalorder %s23, 1
          %s181 = scalar_select %p180, %s23, 1
          %p182 = scmp.lt.s32.totalorder %s24, 0
          %s183 = scalar_select %p182, %s24, 0
          %s184 = sadd.s32 %s183, %s181
          %s185 = smul.addr %s184, 8
          %s186 = scalar_lea.vmem %s0, %s185
        $region28: #{tpu_custom_call.1} parent=23 // pred_fallthru
          _
        // Predicated region
        $region29: #{tpu_custom_call.1} parent=23 // pred_check
          %p187 = pneg %p76
        $region30: #{tpu_custom_call.1} parent=23 // pred_check_branch
          %189 = sbr.rel (%p187) target = $region32
        $region31: #{tpu_custom_call.1} parent=23 // pred_region
          %s190 = sand.u32 %s66, 1
          %s191 = scalar_lea.sflag [#allocation3], %s190
          %s192 = sand.u32 %s66, 1
          %s193 = smul.addr %s192, 8
          %s194 = scalar_lea.vmem [#allocation2], %s193
          %s196 = ssub.s32 128, 128
          %197 = vsyncadd %s191, %s196
          %s198 = smul.addr %s23, 128
          %s199 = scalar_lea.hbm %s1, %s198
          %s201 = sshll.u32 %s194, 4
          %s202 = int_to_ptr.vmem [resolvable:$true] %s201
          %204 = dma.hbm_to_vmem [thread:$0]  %s199, 128, %s202, %s191
        $region32: #{tpu_custom_call.1} parent=23 // pred_fallthru
          _
      $region24: #{tpu_custom_call.1} parent=5 // pred_fallthru
        _
      %p205 = scmp.le.s32.totalorder 1, %s16
      %p206 = scmp.lt.s32.totalorder %s16, 3
      %p207 = pnand %p205, %p206
      %p208 = pneg %p207
      // Predicated region
      $region33: #{tpu_custom_call.1} parent=5 // pred_check
        _
      $region34: #{tpu_custom_call.1} parent=5 // pred_check_branch
        %210 = sbr.rel (%p207) target = $region36
      $region35: #{tpu_custom_call.1} parent=5 // pred_region
        %s211 = ssub.s32 %s16, 1
        %s212 = sand.u32 %s69, 1
        %s213 = scalar_lea.sflag [#allocation3], %s212
        %s214 = sand.u32 %s69, 1
        %s215 = smul.addr %s214, 8
        %s216 = scalar_lea.vmem [#allocation2], %s215
        // Predicated region
        $region37: #{tpu_custom_call.1} parent=35 // pred_check
          %p217 = pneg %p82
        $region38: #{tpu_custom_call.1} parent=35 // pred_check_branch
          %219 = sbr.rel (%p217) target = $region40
        $region39: #{tpu_custom_call.1} parent=35 // pred_region
          %220 = dma.done %s213, 128
        $region40: #{tpu_custom_call.1} parent=35 // pred_fallthru
          _
        %p221 = scmp.lt.s32.totalorder %s25, 1
        %s222 = scalar_select %p221, %s25, 1
        %p223 = scmp.lt.s32.totalorder %s26, 0
        %s224 = scalar_select %p223, %s26, 0
        %s225 = sadd.s32 %s224, %s222
        %s226 = smul.addr %s225, 8
        %s227 = scalar_lea.vmem %s0, %s226
        %p228 = pneg %p56
        %p229 = pneg %p53
        %s230 = sand.u32 %s69, 1
        %s231 = scalar_lea.sflag [#allocation3], %s230
        %s232 = sand.u32 %s69, 1
        %s233 = smul.addr %s232, 8
        %s234 = scalar_lea.vmem [#allocation2], %s233
        %p235 = pneg %p82
        %p236 = pneg %p79
        %p237 = pneg %p103
        %p238 = pneg %p100
        %p239 = pneg %p124
        %p240 = pneg %p121
        %p241 = pneg %p152
        %p242 = pneg %p149
        %s243 = sand.u32 %s139, 1
        %s244 = scalar_lea.sflag [#allocation4], %s243
        %s245 = sand.u32 %s139, 1
        %s246 = smul.addr %s245, 8
        %s247 = scalar_lea.vmem [#allocation5], %s246
        %p248 = scmp.lt.s32.totalorder %s25, 1
        %s249 = scalar_select %p248, %s25, 1
        %p250 = scmp.lt.s32.totalorder %s26, 0
        %s251 = scalar_select %p250, %s26, 0
        %s252 = sadd.s32 %s251, %s249
        %s253 = smul.addr %s252, 8
        %s254 = scalar_lea.vmem %s0, %s253
        %v255 = vld [vmem:[%s216] sm:$0xff]
        %v256 = vld [vmem:[%s254] sm:$0x1]
        %v257 = vlaneseq
        %v258 = vshrl.u32 %v257, 7
        %v259 = vsub.s32 0, %v258
        %v260 = vrot.slane %v256, %v259
        %261 = vset.pattern.permute.xlu0 %v260
        %262 = vperm.xlu0 %261, %v255
        %v263 = vpop.permute.xlu0 %262
        %v264 = vld [vmem:[%s254 + $0x1] sm:$0x1]
        %v265 = vlaneseq
        %v266 = vshrl.u32 %v265, 7
        %v267 = vsub.s32 0, %v266
        %v268 = vrot.slane %v264, %v267
        %269 = vset.pattern.permute.xlu0 %v268
        %270 = vperm.xlu0 %269, %v255
        %v271 = vpop.permute.xlu0 %270
        %v272 = vld [vmem:[%s254 + $0x2] sm:$0x1]
        %v273 = vlaneseq
        %v274 = vshrl.u32 %v273, 7
        %v275 = vsub.s32 0, %v274
        %v276 = vrot.slane %v272, %v275
        %277 = vset.pattern.permute.xlu0 %v276
        %278 = vperm.xlu0 %277, %v255
        %v279 = vpop.permute.xlu0 %278
        %v280 = vld [vmem:[%s254 + $0x3] sm:$0x1]
        %v281 = vlaneseq
        %v282 = vshrl.u32 %v281, 7
        %v283 = vsub.s32 0, %v282
        %v284 = vrot.slane %v280, %v283
        %285 = vset.pattern.permute.xlu0 %v284
        %286 = vperm.xlu0 %285, %v255
        %v287 = vpop.permute.xlu0 %286
        %v288 = vld [vmem:[%s254 + $0x4] sm:$0x1]
        %v289 = vlaneseq
        %v290 = vshrl.u32 %v289, 7
        %v291 = vsub.s32 0, %v290
        %v292 = vrot.slane %v288, %v291
        %293 = vset.pattern.permute.xlu0 %v292
        %294 = vperm.xlu0 %293, %v255
        %v295 = vpop.permute.xlu0 %294
        %v296 = vadd.f32 %v271, %v287
        %v297 = vadd.f32 %v279, %v295
        %v298 = vsub.f32 %v271, %v287
        %v299 = vand.u32 2147483647, %v298
        %v300 = vsub.f32 %v279, %v295
        %v301 = vand.u32 2147483647, %v300
        %v302 = vld [vmem:[%s2] sm:$0xff]
        %s303 = scalar_lea.vmem %s2, 8
        %v304 = vld [vmem:[%s303] sm:$0xff]
        %vm305 = vcmask 64512
        %v307 = vsel %vm305, %v304, 0
        %309 = vmatprep.subr.mxu0 0.0
        %310 = vmatpush1.msra.mxu0 %v296
        %311 = vmatprep.subr.mxu0 0.0
        %312 = vmatpush1.msra.mxu0 0.0
        %313 = vmatprep.subr.mxu0 0.0
        %314 = vmatpush1.msra.mxu0 0.0
        %315 = vmatprep.subr.mxu0 0.0
        %316 = vmatpush1.msra.mxu0 0.0
        %317 = vmatprep.subr.mxu0 0.0
        %318 = vmatpush1.msra.mxu0 0.0
        %319 = vmatprep.subr.mxu0 0.0
        %320 = vmatpush1.msra.mxu0 0.0
        %321 = vmatprep.subr.mxu0 0.0
        %322 = vmatpush1.msra.mxu0 0.0
        %323 = vmatprep.subr.mxu0 0.0
        %324 = vmatpush1.msra.mxu0 0.0
        %325 = vmatprep.subr.mxu0 0.0
        %326 = vmatpush1.msra.mxu0 0.0
        %327 = vmatprep.subr.mxu0 0.0
        %328 = vmatpush1.msra.mxu0 0.0
        %329 = vmatprep.subr.mxu0 0.0
        %330 = vmatpush1.msra.mxu0 0.0
        %331 = vmatprep.subr.mxu0 0.0
        %332 = vmatpush1.msra.mxu0 0.0
        %333 = vmatprep.subr.mxu0 0.0
        %334 = vmatpush1.msra.mxu0 0.0
        %335 = vmatprep.subr.mxu0 0.0
        %336 = vmatpush1.msra.mxu0 0.0
        %337 = vmatprep.subr.mxu0 0.0
        %338 = vmatpush1.msra.mxu0 0.0
        %339 = vmatprep.subr.mxu0 0.0
        %340 = vmatpush1.msra.mxu0 0.0
        %341 = vmatprep.subr.mxu0 0.0
        %342 = vmatpush1.msra.mxu0 0.0
        %343 = vmatprep.subr.mxu0 0.0
        %344 = vmatpush1.msra.mxu0 0.0
        %345 = vmatprep.subr.mxu0 0.0
        %346 = vmatpush1.msra.mxu0 0.0
        %347 = vmatprep.subr.mxu0 0.0
        %348 = vmatpush1.msra.mxu0 0.0
        %349 = vmatprep.subr.mxu0 0.0
        %350 = vmatpush1.msra.mxu0 0.0
        %351 = vmatprep.subr.mxu0 0.0
        %352 = vmatpush1.msra.mxu0 0.0
        %353 = vmatprep.subr.mxu0 0.0
        %354 = vmatpush1.msra.mxu0 0.0
        %355 = vmatprep.subr.mxu0 0.0
        %356 = vmatpush1.msra.mxu0 0.0
        %357 = vmatprep.subr.mxu0 0.0
        %358 = vmatpush1.msra.mxu0 0.0
        %359 = vmatprep.subr.mxu0 0.0
        %360 = vmatpush1.msra.mxu0 0.0
        %361 = vmatprep.subr.mxu0 0.0
        %362 = vmatpush1.msra.mxu0 0.0
        %363 = vmatprep.subr.mxu0 0.0
        %364 = vmatpush1.msra.mxu0 0.0
        %365 = vmatprep.subr.mxu0 0.0
        %366 = vmatpush1.msra.mxu0 0.0
        %367 = vmatprep.subr.mxu0 0.0
        %368 = vmatpush1.msra.mxu0 0.0
        %369 = vmatprep.subr.mxu0 0.0
        %370 = vmatpush1.msra.mxu0 0.0
        %371 = vmatprep.subr.mxu0 0.0
        %372 = vmatpush1.msra.mxu0 0.0
        %373 = vmatprep.mubr.f32.mxu0 0.0
        %374 = vmatmul.mubr.f32.gmra.mrb[0].mxu0 %v307
        %v375 = vpop.f32.mrb[0].mxu0
        %v376 = vadd.f32 0.0, %v375
        %v377 = vpop.f32.mrb[0].mxu0
        %378 = vdwg.mxu0
        %v380 = vsel %vm305, %v302, 0
        %382 = vmatprep.subr.mxu0 0.0
        %383 = vmatpush1.msra.mxu0 %v263
        %384 = vmatprep.subr.mxu0 0.0
        %385 = vmatpush1.msra.mxu0 0.0
        %386 = vmatprep.subr.mxu0 0.0
        %387 = vmatpush1.msra.mxu0 0.0
        %388 = vmatprep.subr.mxu0 0.0
        %389 = vmatpush1.msra.mxu0 0.0
        %390 = vmatprep.subr.mxu0 0.0
        %391 = vmatpush1.msra.mxu0 0.0
        %392 = vmatprep.subr.mxu0 0.0
        %393 = vmatpush1.msra.mxu0 0.0
        %394 = vmatprep.subr.mxu0 0.0
        %395 = vmatpush1.msra.mxu0 0.0
        %396 = vmatprep.subr.mxu0 0.0
        %397 = vmatpush1.msra.mxu0 0.0
        %398 = vmatprep.subr.mxu0 0.0
        %399 = vmatpush1.msra.mxu0 0.0
        %400 = vmatprep.subr.mxu0 0.0
        %401 = vmatpush1.msra.mxu0 0.0
        %402 = vmatprep.subr.mxu0 0.0
        %403 = vmatpush1.msra.mxu0 0.0
        %404 = vmatprep.subr.mxu0 0.0
        %405 = vmatpush1.msra.mxu0 0.0
        %406 = vmatprep.subr.mxu0 0.0
        %407 = vmatpush1.msra.mxu0 0.0
        %408 = vmatprep.subr.mxu0 0.0
        %409 = vmatpush1.msra.mxu0 0.0
        %410 = vmatprep.subr.mxu0 0.0
        %411 = vmatpush1.msra.mxu0 0.0
        %412 = vmatprep.subr.mxu0 0.0
        %413 = vmatpush1.msra.mxu0 0.0
        %414 = vmatprep.subr.mxu0 0.0
        %415 = vmatpush1.msra.mxu0 0.0
        %416 = vmatprep.subr.mxu0 0.0
        %417 = vmatpush1.msra.mxu0 0.0
        %418 = vmatprep.subr.mxu0 0.0
        %419 = vmatpush1.msra.mxu0 0.0
        %420 = vmatprep.subr.mxu0 0.0
        %421 = vmatpush1.msra.mxu0 0.0
        %422 = vmatprep.subr.mxu0 0.0
        %423 = vmatpush1.msra.mxu0 0.0
        %424 = vmatprep.subr.mxu0 0.0
        %425 = vmatpush1.msra.mxu0 0.0
        %426 = vmatprep.subr.mxu0 0.0
        %427 = vmatpush1.msra.mxu0 0.0
        %428 = vmatprep.subr.mxu0 0.0
        %429 = vmatpush1.msra.mxu0 0.0
        %430 = vmatprep.subr.mxu0 0.0
        %431 = vmatpush1.msra.mxu0 0.0
        %432 = vmatprep.subr.mxu0 0.0
        %433 = vmatpush1.msra.mxu0 0.0
        %434 = vmatprep.subr.mxu0 0.0
        %435 = vmatpush1.msra.mxu0 0.0
        %436 = vmatprep.subr.mxu0 0.0
        %437 = vmatpush1.msra.mxu0 0.0
        %438 = vmatprep.subr.mxu0 0.0
        %439 = vmatpush1.msra.mxu0 0.0
        %440 = vmatprep.subr.mxu0 0.0
        %441 = vmatpush1.msra.mxu0 0.0
        %442 = vmatprep.subr.mxu0 0.0
        %443 = vmatpush1.msra.mxu0 0.0
        %444 = vmatprep.subr.mxu0 0.0
        %445 = vmatpush1.msra.mxu0 0.0
        %446 = vmatprep.mubr.f32.mxu0 0.0
        %447 = vmatmul.mubr.f32.gmra.mrb[0].mxu0 %v380
        %v448 = vpop.f32.mrb[0].mxu0
        %v449 = vadd.f32 %v376, %v448
        %v450 = vpop.f32.mrb[0].mxu0
        %451 = vdwg.mxu0
        %s452 = scalar_lea.vmem %s2, 16
        %v453 = vld [vmem:[%s452] sm:$0xff]
        %v455 = vsel %vm305, %v453, 0
        %457 = vmatprep.subr.mxu0 0.0
        %458 = vmatpush1.msra.mxu0 %v297
        %459 = vmatprep.subr.mxu0 0.0
        %460 = vmatpush1.msra.mxu0 0.0
        %461 = vmatprep.subr.mxu0 0.0
        %462 = vmatpush1.msra.mxu0 0.0
        %463 = vmatprep.subr.mxu0 0.0
        %464 = vmatpush1.msra.mxu0 0.0
        %465 = vmatprep.subr.mxu0 0.0
        %466 = vmatpush1.msra.mxu0 0.0
        %467 = vmatprep.subr.mxu0 0.0
        %468 = vmatpush1.msra.mxu0 0.0
        %469 = vmatprep.subr.mxu0 0.0
        %470 = vmatpush1.msra.mxu0 0.0
        %471 = vmatprep.subr.mxu0 0.0
        %472 = vmatpush1.msra.mxu0 0.0
        %473 = vmatprep.subr.mxu0 0.0
        %474 = vmatpush1.msra.mxu0 0.0
        %475 = vmatprep.subr.mxu0 0.0
        %476 = vmatpush1.msra.mxu0 0.0
        %477 = vmatprep.subr.mxu0 0.0
        %478 = vmatpush1.msra.mxu0 0.0
        %479 = vmatprep.subr.mxu0 0.0
        %480 = vmatpush1.msra.mxu0 0.0
        %481 = vmatprep.subr.mxu0 0.0
        %482 = vmatpush1.msra.mxu0 0.0
        %483 = vmatprep.subr.mxu0 0.0
        %484 = vmatpush1.msra.mxu0 0.0
        %485 = vmatprep.subr.mxu0 0.0
        %486 = vmatpush1.msra.mxu0 0.0
        %487 = vmatprep.subr.mxu0 0.0
        %488 = vmatpush1.msra.mxu0 0.0
        %489 = vmatprep.subr.mxu0 0.0
        %490 = vmatpush1.msra.mxu0 0.0
        %491 = vmatprep.subr.mxu0 0.0
        %492 = vmatpush1.msra.mxu0 0.0
        %493 = vmatprep.subr.mxu0 0.0
        %494 = vmatpush1.msra.mxu0 0.0
        %495 = vmatprep.subr.mxu0 0.0
        %496 = vmatpush1.msra.mxu0 0.0
        %497 = vmatprep.subr.mxu0 0.0
        %498 = vmatpush1.msra.mxu0 0.0
        %499 = vmatprep.subr.mxu0 0.0
        %500 = vmatpush1.msra.mxu0 0.0
        %501 = vmatprep.subr.mxu0 0.0
        %502 = vmatpush1.msra.mxu0 0.0
        %503 = vmatprep.subr.mxu0 0.0
        %504 = vmatpush1.msra.mxu0 0.0
        %505 = vmatprep.subr.mxu0 0.0
        %506 = vmatpush1.msra.mxu0 0.0
        %507 = vmatprep.subr.mxu0 0.0
        %508 = vmatpush1.msra.mxu0 0.0
        %509 = vmatprep.subr.mxu0 0.0
        %510 = vmatpush1.msra.mxu0 0.0
        %511 = vmatprep.subr.mxu0 0.0
        %512 = vmatpush1.msra.mxu0 0.0
        %513 = vmatprep.subr.mxu0 0.0
        %514 = vmatpush1.msra.mxu0 0.0
        %515 = vmatprep.subr.mxu0 0.0
        %516 = vmatpush1.msra.mxu0 0.0
        %517 = vmatprep.subr.mxu0 0.0
        %518 = vmatpush1.msra.mxu0 0.0
        %519 = vmatprep.subr.mxu0 0.0
        %520 = vmatpush1.msra.mxu0 0.0
        %521 = vmatprep.mubr.f32.mxu0 0.0
        %522 = vmatmul.mubr.f32.gmra.mrb[0].mxu0 %v455
        %v523 = vpop.f32.mrb[0].mxu0
        %v524 = vadd.f32 0.0, %v523
        %v525 = vpop.f32.mrb[0].mxu0
        %526 = vdwg.mxu0
        %v527 = vadd.f32 %v449, %v524
        %s528 = scalar_lea.vmem %s2, 24
        %v529 = vld [vmem:[%s528] sm:$0xff]
        %v531 = vsel %vm305, %v529, 0
        %533 = vmatprep.subr.mxu0 0.0
        %534 = vmatpush1.msra.mxu0 %v299
        %535 = vmatprep.subr.mxu0 0.0
        %536 = vmatpush1.msra.mxu0 0.0
        %537 = vmatprep.subr.mxu0 0.0
        %538 = vmatpush1.msra.mxu0 0.0
        %539 = vmatprep.subr.mxu0 0.0
        %540 = vmatpush1.msra.mxu0 0.0
        %541 = vmatprep.subr.mxu0 0.0
        %542 = vmatpush1.msra.mxu0 0.0
        %543 = vmatprep.subr.mxu0 0.0
        %544 = vmatpush1.msra.mxu0 0.0
        %545 = vmatprep.subr.mxu0 0.0
        %546 = vmatpush1.msra.mxu0 0.0
        %547 = vmatprep.subr.mxu0 0.0
        %548 = vmatpush1.msra.mxu0 0.0
        %549 = vmatprep.subr.mxu0 0.0
        %550 = vmatpush1.msra.mxu0 0.0
        %551 = vmatprep.subr.mxu0 0.0
        %552 = vmatpush1.msra.mxu0 0.0
        %553 = vmatprep.subr.mxu0 0.0
        %554 = vmatpush1.msra.mxu0 0.0
        %555 = vmatprep.subr.mxu0 0.0
        %556 = vmatpush1.msra.mxu0 0.0
        %557 = vmatprep.subr.mxu0 0.0
        %558 = vmatpush1.msra.mxu0 0.0
        %559 = vmatprep.subr.mxu0 0.0
        %560 = vmatpush1.msra.mxu0 0.0
        %561 = vmatprep.subr.mxu0 0.0
        %562 = vmatpush1.msra.mxu0 0.0
        %563 = vmatprep.subr.mxu0 0.0
        %564 = vmatpush1.msra.mxu0 0.0
        %565 = vmatprep.subr.mxu0 0.0
        %566 = vmatpush1.msra.mxu0 0.0
        %567 = vmatprep.subr.mxu0 0.0
        %568 = vmatpush1.msra.mxu0 0.0
        %569 = vmatprep.subr.mxu0 0.0
        %570 = vmatpush1.msra.mxu0 0.0
        %571 = vmatprep.subr.mxu0 0.0
        %572 = vmatpush1.msra.mxu0 0.0
        %573 = vmatprep.subr.mxu0 0.0
        %574 = vmatpush1.msra.mxu0 0.0
        %575 = vmatprep.subr.mxu0 0.0
        %576 = vmatpush1.msra.mxu0 0.0
        %577 = vmatprep.subr.mxu0 0.0
        %578 = vmatpush1.msra.mxu0 0.0
        %579 = vmatprep.subr.mxu0 0.0
        %580 = vmatpush1.msra.mxu0 0.0
        %581 = vmatprep.subr.mxu0 0.0
        %582 = vmatpush1.msra.mxu0 0.0
        %583 = vmatprep.subr.mxu0 0.0
        %584 = vmatpush1.msra.mxu0 0.0
        %585 = vmatprep.subr.mxu0 0.0
        %586 = vmatpush1.msra.mxu0 0.0
        %587 = vmatprep.subr.mxu0 0.0
        %588 = vmatpush1.msra.mxu0 0.0
        %589 = vmatprep.subr.mxu0 0.0
        %590 = vmatpush1.msra.mxu0 0.0
        %591 = vmatprep.subr.mxu0 0.0
        %592 = vmatpush1.msra.mxu0 0.0
        %593 = vmatprep.subr.mxu0 0.0
        %594 = vmatpush1.msra.mxu0 0.0
        %595 = vmatprep.subr.mxu0 0.0
        %596 = vmatpush1.msra.mxu0 0.0
        %597 = vmatprep.mubr.f32.mxu0 0.0
        %598 = vmatmul.mubr.f32.gmra.mrb[0].mxu0 %v531
        %v599 = vpop.f32.mrb[0].mxu0
        %v600 = vadd.f32 0.0, %v599
        %v601 = vpop.f32.mrb[0].mxu0
        %602 = vdwg.mxu0
        %v603 = vadd.f32 %v527, %v600
        %s604 = scalar_lea.vmem %s2, 32
        %v605 = vld [vmem:[%s604] sm:$0xff]
        %v607 = vsel %vm305, %v605, 0
        %609 = vmatprep.subr.mxu0 0.0
        %610 = vmatpush1.msra.mxu0 %v301
        %611 = vmatprep.subr.mxu0 0.0
        %612 = vmatpush1.msra.mxu0 0.0
        %613 = vmatprep.subr.mxu0 0.0
        %614 = vmatpush1.msra.mxu0 0.0
        %615 = vmatprep.subr.mxu0 0.0
        %616 = vmatpush1.msra.mxu0 0.0
        %617 = vmatprep.subr.mxu0 0.0
        %618 = vmatpush1.msra.mxu0 0.0
        %619 = vmatprep.subr.mxu0 0.0
        %620 = vmatpush1.msra.mxu0 0.0
        %621 = vmatprep.subr.mxu0 0.0
        %622 = vmatpush1.msra.mxu0 0.0
        %623 = vmatprep.subr.mxu0 0.0
        %624 = vmatpush1.msra.mxu0 0.0
        %625 = vmatprep.subr.mxu0 0.0
        %626 = vmatpush1.msra.mxu0 0.0
        %627 = vmatprep.subr.mxu0 0.0
        %628 = vmatpush1.msra.mxu0 0.0
        %629 = vmatprep.subr.mxu0 0.0
        %630 = vmatpush1.msra.mxu0 0.0
        %631 = vmatprep.subr.mxu0 0.0
        %632 = vmatpush1.msra.mxu0 0.0
        %633 = vmatprep.subr.mxu0 0.0
        %634 = vmatpush1.msra.mxu0 0.0
        %635 = vmatprep.subr.mxu0 0.0
        %636 = vmatpush1.msra.mxu0 0.0
        %637 = vmatprep.subr.mxu0 0.0
        %638 = vmatpush1.msra.mxu0 0.0
        %639 = vmatprep.subr.mxu0 0.0
        %640 = vmatpush1.msra.mxu0 0.0
        %641 = vmatprep.subr.mxu0 0.0
        %642 = vmatpush1.msra.mxu0 0.0
        %643 = vmatprep.subr.mxu0 0.0
        %644 = vmatpush1.msra.mxu0 0.0
        %645 = vmatprep.subr.mxu0 0.0
        %646 = vmatpush1.msra.mxu0 0.0
        %647 = vmatprep.subr.mxu0 0.0
        %648 = vmatpush1.msra.mxu0 0.0
        %649 = vmatprep.subr.mxu0 0.0
        %650 = vmatpush1.msra.mxu0 0.0
        %651 = vmatprep.subr.mxu0 0.0
        %652 = vmatpush1.msra.mxu0 0.0
        %653 = vmatprep.subr.mxu0 0.0
        %654 = vmatpush1.msra.mxu0 0.0
        %655 = vmatprep.subr.mxu0 0.0
        %656 = vmatpush1.msra.mxu0 0.0
        %657 = vmatprep.subr.mxu0 0.0
        %658 = vmatpush1.msra.mxu0 0.0
        %659 = vmatprep.subr.mxu0 0.0
        %660 = vmatpush1.msra.mxu0 0.0
        %661 = vmatprep.subr.mxu0 0.0
        %662 = vmatpush1.msra.mxu0 0.0
        %663 = vmatprep.subr.mxu0 0.0
        %664 = vmatpush1.msra.mxu0 0.0
        %665 = vmatprep.subr.mxu0 0.0
        %666 = vmatpush1.msra.mxu0 0.0
        %667 = vmatprep.subr.mxu0 0.0
        %668 = vmatpush1.msra.mxu0 0.0
        %669 = vmatprep.subr.mxu0 0.0
        %670 = vmatpush1.msra.mxu0 0.0
        %671 = vmatprep.subr.mxu0 0.0
        %672 = vmatpush1.msra.mxu0 0.0
        %673 = vmatprep.mubr.f32.mxu0 0.0
        %674 = vmatmul.mubr.f32.gmra.mrb[0].mxu0 %v607
        %v675 = vpop.f32.mrb[0].mxu0
        %v676 = vadd.f32 0.0, %v675
        %v677 = vpop.f32.mrb[0].mxu0
        %678 = vdwg.mxu0
        %v679 = vadd.f32 %v603, %v676
        %v680 = vld [vmem:[%s3] sm:$0xff]
        %682 = vset.pattern.permute.xlu0 0
        %683 = vperm.xlu0 %682, %v680
        %v684 = vpop.permute.xlu0 %683
        %v686 = vadd.f32 %v679, %v684
        %687 = vst [vmem:[%s247] sm:$0xff] %v686
        %s688 = sand.u32 %s139, 1
        %s689 = scalar_lea.sflag [#allocation4], %s688
        %s690 = sand.u32 %s139, 1
        %s691 = smul.addr %s690, 8
        %s692 = scalar_lea.vmem [#allocation5], %s691
        // Predicated region
        $region41: #{tpu_custom_call.1} parent=35 // pred_check
          %p693 = pneg %p149
        $region42: #{tpu_custom_call.1} parent=35 // pred_check_branch
          %695 = sbr.rel (%p693) target = $region44
        $region43: #{tpu_custom_call.1} parent=35 // pred_region
          %s697 = ssub.s32 128, 128
          %698 = vsyncadd %s689, %s697
          %s699 = sadd.s32 %s26, %s25
          %s700 = smul.addr %s699, 128
          %s701 = scalar_lea.hbm %s4, %s700
          %s703 = sshll.u32 %s692, 4
          %s704 = int_to_ptr.vmem [resolvable:$true] %s703
          %706 = dma.vmem_to_hbm [thread:$0]  %s704, 128, %s701, %s689
        $region44: #{tpu_custom_call.1} parent=35 // pred_fallthru
          _
      $region36: #{tpu_custom_call.1} parent=5 // pred_fallthru
        _
      %p707 = scmp.le.s32.totalorder 2, %s16
      // Predicated region
      $region45: #{tpu_custom_call.1} parent=5 // pred_check
        %p708 = pneg %p707
      $region46: #{tpu_custom_call.1} parent=5 // pred_check_branch
        %710 = sbr.rel (%p708) target = $region48
      $region47: #{tpu_custom_call.1} parent=5 // pred_region
        %s711 = ssub.s32 %s16, 2
        // Predicated region
        $region49: #{tpu_custom_call.1} parent=47 // pred_check
          %p712 = pneg %p155
        $region50: #{tpu_custom_call.1} parent=47 // pred_check_branch
          %714 = sbr.rel (%p712) target = $region52
        $region51: #{tpu_custom_call.1} parent=47 // pred_region
          %s715 = sand.u32 %s140, 1
          %s716 = scalar_lea.sflag [#allocation4], %s715
          %s717 = sand.u32 %s140, 1
          %s718 = smul.addr %s717, 8
          %s719 = scalar_lea.vmem [#allocation5], %s718
          %720 = dma.done %s716, 128
        $region52: #{tpu_custom_call.1} parent=47 // pred_fallthru
          _
      $region48: #{tpu_custom_call.1} parent=5 // pred_fallthru
        _
    $region6: #{tpu_custom_call.1} parent=1 // loop_footer
      %s20 = sadd.s32 1, %s16
    $region7: #{tpu_custom_call.1} parent=1 // loop_footer_branch
      %15 = sbr.rel target = $region3
    $region8: #{tpu_custom_call.1} parent=1 // loop_exit
      _
    %721 = vsyncpa [#allocation3], 1
    %s722 = scalar_lea.sflag [#allocation3], 1
    %723 = vsyncpa %s722, 1
    %724 = vsyncpa [#allocation4], 1
    %s725 = scalar_lea.sflag [#allocation4], 1
    %726 = vsyncpa %s725, 1

// kernel: tpu_custom_call.1
$region0: #{tpu_custom_call.1}
  #allocation0 [shape = 'u32[]', space=smem, size = 0x4, offset = 0x4, fixed_abs, tag = 'smem constant byte address 0x4 - core index']
  #allocation1 [shape = 'u32[144,128]{1,0:T(1,128)}', space=vmem, size = 0x12000, scoped, tag = 'internal scratch']
  %s0 = inlined_call_operand.hbm [shape: f32[2,5,8,128], index: 0, kind: input, shape index: {}]
  %s1 = inlined_call_operand.hbm [shape: f32[5,8,8], index: 1, kind: input, shape index: {}]
  %s2 = inlined_call_operand.vmem [shape: f32[8,1], index: 2, kind: input, shape index: {}]
  %s3 = inlined_call_operand.hbm [shape: f32[2,8,128], index: 3, kind: output, shape index: {}]
  %s4 = sld [smem:[#allocation0]]
  $region53: #{tpu_custom_call.1} parent=0
    _
  %s6 = ssub.s32 1, %s4
  %s7 = scalar_select 0, %s6, %s4
  $region1: #{tpu_custom_call.1} parent=0
    #allocation2 [shape = 'u8[40960]{0}', space=vmem, size = 0xa000, scoped, tag = 'input window, operand 0']
    #allocation3 [shape = 's32[2]{0}', space=sflag, size = 0x8, scoped, tag = 'scoped memory for tpu_custom_call.1']
    #allocation4 [shape = 's32[2]{0}', space=sflag, size = 0x8, scoped, tag = 'scoped memory for tpu_custom_call.1']
    #allocation5 [shape = 'u8[20480]{0}', space=vmem, size = 0x5000, scoped, tag = 'input window, operand 1, single buffered']
    #allocation6 [shape = 's32[1]{0}', space=sflag, size = 0x4, scoped, tag = 'scoped memory for tpu_custom_call.1']
    #allocation7 [shape = 'u8[8192]{0}', space=vmem, size = 0x2000, scoped, tag = 'output window, operand 0']
    %8 = vsyncpa [#allocation3], 0
    %s9 = scalar_lea.sflag [#allocation3], 1
    %10 = vsyncpa %s9, 0
    %11 = vsyncpa [#allocation6], 0
    %12 = vsyncpa [#allocation4], 0
    %s13 = scalar_lea.sflag [#allocation4], 1
    %14 = vsyncpa %s13, 0
    loop: start=0, step=1, limit=4
    $region2: #{tpu_custom_call.1} parent=1 // loop_pre_header
      _
    $region3: #{tpu_custom_call.1} parent=1 // loop_header
      %s16 = sphi 0, %s20
      %p17 = scmp.ge.s32.totalorder %s16, 4
      %s23 = sphi 0, %s35
      %s24 = sphi 0, %s31
      %s25 = sphi 0, %s23
      %s26 = sphi 0, %s24
      %s27 = sphi 0, %s25
      %s28 = sphi 0, %s26
      %s40 = sphi 0, %s42
      %s43 = sphi 0, %s40
      %s44 = sphi 0, %s43
      %s60 = sphi 0, %s44
      %s64 = sphi 0, %s64
      %s66 = sphi 0, %s64
      %s67 = sphi 0, %s66
      %s81 = sphi 0, %s67
      %s85 = sphi 0, %s85
      %s87 = sphi 0, %s85
      %s88 = sphi 0, %s87
      %s102 = sphi 0, %s88
      %s110 = sphi 0, %s112
      %s113 = sphi 0, %s110
      %s114 = sphi 0, %s113
      %s130 = sphi 0, %s114
    $region4: #{tpu_custom_call.1} parent=1 // loop_header_branch
      %19 = sbr.rel (%p17) target = $region8
    $region5: #{tpu_custom_call.1} parent=1 // loop_body
      %s21 = ssub.s32 %s16, 1
      %s22 = ssub.s32 %s16, 2
      %s29 = sadd.s32 1, %s24
      %p30 = scmp.ge.s32.totalorder %s29, 1
      %s31 = scalar_select %p30, 0, %s29
      %s32 = sadd.s32 1, %s23
      %s33 = scalar_select %p30, %s32, %s23
      %p34 = scmp.ge.s32.totalorder %s33, 2
      %s35 = scalar_select %p34, 0, %s33
      %s36 = ssub.s32 %s23, %s35
      %s37 = ssub.s32 %s24, %s31
      %s38 = sor.u32 %s36, %s37
      %p39 = scmp.eq.s32.totalorder %s38, 0
      %s41 = sadd.s32 %s40, 1
      %s42 = scalar_select %p39, %s40, %s41
      %p45 = pneg %p39
      %p46 = scmp.eq.s32.totalorder %s16, 1
      %p47 = por %p45, %p46
      %p48 = scmp.ne.s32.totalorder %s40, %s43
      %p49 = scmp.eq.s32.totalorder %s16, 0
      %p50 = por %p48, %p49
      %p51 = scmp.ne.s32.totalorder %s40, %s43
      %p52 = scmp.eq.s32.totalorder %s21, 1
      %p53 = por %p51, %p52
      %p54 = scmp.ne.s32.totalorder %s43, %s44
      %p55 = scmp.eq.s32.totalorder %s21, 0
      %p56 = por %p54, %p55
      %p57 = scmp.ne.s32.totalorder %s43, %s44
      %p58 = scmp.eq.s32.totalorder %s22, 1
      %p59 = por %p57, %p58
      %p61 = scmp.ne.s32.totalorder %s44, %s60
      %p62 = scmp.eq.s32.totalorder %s22, 0
      %p63 = por %p61, %p62
      %s65 = sadd.s32 %s64, 1
      %p68 = scmp.eq.s32.totalorder %s16, 1
      %p69 = scmp.ne.s32.totalorder %s64, %s66
      %p70 = scmp.eq.s32.totalorder %s16, 0
      %p71 = por %p69, %p70
      %p72 = scmp.ne.s32.totalorder %s64, %s66
      %p73 = scmp.eq.s32.totalorder %s21, 1
      %p74 = por %p72, %p73
      %p75 = scmp.ne.s32.totalorder %s66, %s67
      %p76 = scmp.eq.s32.totalorder %s21, 0
      %p77 = por %p75, %p76
      %p78 = scmp.ne.s32.totalorder %s66, %s67
      %p79 = scmp.eq.s32.totalorder %s22, 1
      %p80 = por %p78, %p79
      %p82 = scmp.ne.s32.totalorder %s67, %s81
      %p83 = scmp.eq.s32.totalorder %s22, 0
      %p84 = por %p82, %p83
      %s86 = sadd.s32 %s85, 1
      %p89 = scmp.eq.s32.totalorder %s16, 1
      %p90 = scmp.ne.s32.totalorder %s85, %s87
      %p91 = scmp.eq.s32.totalorder %s16, 0
      %p92 = por %p90, %p91
      %p93 = scmp.ne.s32.totalorder %s85, %s87
      %p94 = scmp.eq.s32.totalorder %s21, 1
      %p95 = por %p93, %p94
      %p96 = scmp.ne.s32.totalorder %s87, %s88
      %p97 = scmp.eq.s32.totalorder %s21, 0
      %p98 = por %p96, %p97
      %p99 = scmp.ne.s32.totalorder %s87, %s88
      %p100 = scmp.eq.s32.totalorder %s22, 1
      %p101 = por %p99, %p100
      %p103 = scmp.ne.s32.totalorder %s88, %s102
      %p104 = scmp.eq.s32.totalorder %s22, 0
      %p105 = por %p103, %p104
      %s106 = ssub.s32 %s23, %s35
      %s107 = ssub.s32 %s24, %s31
      %s108 = sor.u32 %s106, %s107
      %p109 = scmp.eq.s32.totalorder %s108, 0
      %s111 = sadd.s32 %s110, 1
      %s112 = scalar_select %p109, %s110, %s111
      %p115 = pneg %p109
      %p116 = scmp.eq.s32.totalorder %s16, 1
      %p117 = por %p115, %p116
      %p118 = scmp.ne.s32.totalorder %s110, %s113
      %p119 = scmp.eq.s32.totalorder %s16, 0
      %p120 = por %p118, %p119
      %p121 = scmp.ne.s32.totalorder %s110, %s113
      %p122 = scmp.eq.s32.totalorder %s21, 1
      %p123 = por %p121, %p122
      %p124 = scmp.ne.s32.totalorder %s113, %s114
      %p125 = scmp.eq.s32.totalorder %s21, 0
      %p126 = por %p124, %p125
      %p127 = scmp.ne.s32.totalorder %s113, %s114
      %p128 = scmp.eq.s32.totalorder %s22, 1
      %p129 = por %p127, %p128
      %p131 = scmp.ne.s32.totalorder %s114, %s130
      %p132 = scmp.eq.s32.totalorder %s22, 0
      %p133 = por %p131, %p132
      %p134 = scmp.le.s32.totalorder 1, %s16
      %p135 = scmp.lt.s32.totalorder %s16, 3
      %p136 = pnand %p134, %p135
      %p137 = pneg %p136
      // Predicated region
      $region9: #{tpu_custom_call.1} parent=5 // pred_check
        _
      $region10: #{tpu_custom_call.1} parent=5 // pred_check_branch
        %139 = sbr.rel (%p136) target = $region12
      $region11: #{tpu_custom_call.1} parent=5 // pred_region
        %s140 = ssub.s32 %s16, 1
        // Predicated region
        $region13: #{tpu_custom_call.1} parent=11 // pred_check
          %p141 = pneg %p77
        $region14: #{tpu_custom_call.1} parent=11 // pred_check_branch
          %143 = sbr.rel (%p141) target = $region16
        $region15: #{tpu_custom_call.1} parent=11 // pred_region
          %s145 = ssub.s32 640, 640
          %146 = vsyncadd [#allocation6], %s145
          %s147 = sshll.u32 [#allocation5], 4
          %s148 = int_to_ptr.vmem [resolvable:$true] %s147
          %153 = dma.hbm_to_vmem [thread:$0]  %s1, 640, %s148, [#allocation6], 128, 128, 8
        $region16: #{tpu_custom_call.1} parent=11 // pred_fallthru
          _
        // Predicated region
        $region17: #{tpu_custom_call.1} parent=11 // pred_check
          %p154 = pneg %p98
        $region18: #{tpu_custom_call.1} parent=11 // pred_check_branch
          %156 = sbr.rel (%p154) target = $region20
        $region19: #{tpu_custom_call.1} parent=11 // pred_region
          _
        $region20: #{tpu_custom_call.1} parent=11 // pred_fallthru
          _
      $region12: #{tpu_custom_call.1} parent=5 // pred_fallthru
        _
      %p157 = scmp.lt.s32.totalorder %s16, 2
      // Predicated region
      $region21: #{tpu_custom_call.1} parent=5 // pred_check
        %p158 = pneg %p157
      $region22: #{tpu_custom_call.1} parent=5 // pred_check_branch
        %160 = sbr.rel (%p158) target = $region24
      $region23: #{tpu_custom_call.1} parent=5 // pred_region
        // Predicated region
        $region25: #{tpu_custom_call.1} parent=23 // pred_check
          %p161 = pneg %p50
        $region26: #{tpu_custom_call.1} parent=23 // pred_check_branch
          %163 = sbr.rel (%p161) target = $region28
        $region27: #{tpu_custom_call.1} parent=23 // pred_region
          %s164 = sand.u32 %s40, 1
          %s165 = scalar_lea.sflag [#allocation3], %s164
          %s166 = sand.u32 %s40, 1
          %s167 = smul.addr %s166, 40
          %s168 = scalar_lea.vmem [#allocation2], %s167
          %s170 = ssub.s32 640, 640
          %171 = vsyncadd %s165, %s170
          %s172 = smul.addr %s23, 5
          %s173 = sadd.s32 %s24, %s172
          %s174 = smul.addr %s173, 128
          %s175 = scalar_lea.hbm %s0, %s174
          %s176 = sshll.u32 %s168, 4
          %s177 = int_to_ptr.vmem [resolvable:$true] %s176
          %182 = dma.hbm_to_vmem [thread:$0]  %s175, 640, %s177, %s165, 128, 128, 8
        $region28: #{tpu_custom_call.1} parent=23 // pred_fallthru
          _
      $region24: #{tpu_custom_call.1} parent=5 // pred_fallthru
        _
      %p183 = scmp.le.s32.totalorder 1, %s16
      %p184 = scmp.lt.s32.totalorder %s16, 3
      %p185 = pnand %p183, %p184
      %p186 = pneg %p185
      // Predicated region
      $region29: #{tpu_custom_call.1} parent=5 // pred_check
        _
      $region30: #{tpu_custom_call.1} parent=5 // pred_check_branch
        %188 = sbr.rel (%p185) target = $region32
      $region31: #{tpu_custom_call.1} parent=5 // pred_region
        %s189 = ssub.s32 %s16, 1
        %s190 = sand.u32 %s43, 1
        %s191 = scalar_lea.sflag [#allocation3], %s190
        %s192 = sand.u32 %s43, 1
        %s193 = smul.addr %s192, 40
        %s194 = scalar_lea.vmem [#allocation2], %s193
        // Predicated region
        $region33: #{tpu_custom_call.1} parent=31 // pred_check
          %p195 = pneg %p56
        $region34: #{tpu_custom_call.1} parent=31 // pred_check_branch
          %197 = sbr.rel (%p195) target = $region36
        $region35: #{tpu_custom_call.1} parent=31 // pred_region
          %198 = dma.done %s191, 640
        $region36: #{tpu_custom_call.1} parent=31 // pred_fallthru
          _
        // Predicated region
        $region37: #{tpu_custom_call.1} parent=31 // pred_check
          %p199 = pneg %p77
        $region38: #{tpu_custom_call.1} parent=31 // pred_check_branch
          %201 = sbr.rel (%p199) target = $region40
        $region39: #{tpu_custom_call.1} parent=31 // pred_region
          %202 = dma.done [#allocation6], 640
        $region40: #{tpu_custom_call.1} parent=31 // pred_fallthru
          _
        %s203 = sand.u32 %s43, 1
        %s204 = scalar_lea.sflag [#allocation3], %s203
        %s205 = sand.u32 %s43, 1
        %s206 = smul.addr %s205, 40
        %s207 = scalar_lea.vmem [#allocation2], %s206
        %p208 = pneg %p56
        %p209 = pneg %p53
        %p210 = pneg %p77
        %p211 = pneg %p74
        %p212 = pneg %p98
        %p213 = pneg %p95
        %p214 = pneg %p126
        %p215 = pneg %p123
        %s216 = sand.u32 %s113, 1
        %s217 = scalar_lea.sflag [#allocation4], %s216
        %s218 = sand.u32 %s113, 1
        %s219 = smul.addr %s218, 8
        %s220 = scalar_lea.vmem [#allocation7], %s219
        %v221 = vld [vmem:[%s194] sm:$0xff]
        %s222 = scalar_lea.vmem %s194, 8 [#allocation2]
        %v223 = vld [vmem:[%s222] sm:$0xff]
        %s224 = scalar_lea.vmem %s194, 16 [#allocation2]
        %v225 = vld [vmem:[%s224] sm:$0xff]
        %s226 = scalar_lea.vmem %s194, 24 [#allocation2]
        %v227 = vld [vmem:[%s226] sm:$0xff]
        %s228 = scalar_lea.vmem %s194, 32 [#allocation2]
        %v229 = vld [vmem:[%s228] sm:$0xff]
        %v230 = vadd.f32 %v223, %v227
        %v231 = vadd.f32 %v225, %v229
        %v232 = vsub.f32 %v223, %v227
        %v233 = vand.u32 2147483647, %v232
        %v234 = vsub.f32 %v225, %v229
        %v235 = vand.u32 2147483647, %v234
        %v236 = vld [vmem:[#allocation5] sm:$0xff]
        %s237 = scalar_lea.vmem [#allocation5], 8
        %v238 = vld [vmem:[%s237] sm:$0xff]
        %vm239 = vcmask 64512
        %v241 = vsel %vm239, %v238, 0
        %243 = vmatprep.subr.mxu0 0.0
        %244 = vmatpush1.msra.mxu0 %v230
        %245 = vmatprep.subr.mxu0 0.0
        %246 = vmatpush1.msra.mxu0 0.0
        %247 = vmatprep.subr.mxu0 0.0
        %248 = vmatpush1.msra.mxu0 0.0
        %249 = vmatprep.subr.mxu0 0.0
        %250 = vmatpush1.msra.mxu0 0.0
        %251 = vmatprep.subr.mxu0 0.0
        %252 = vmatpush1.msra.mxu0 0.0
        %253 = vmatprep.subr.mxu0 0.0
        %254 = vmatpush1.msra.mxu0 0.0
        %255 = vmatprep.subr.mxu0 0.0
        %256 = vmatpush1.msra.mxu0 0.0
        %257 = vmatprep.subr.mxu0 0.0
        %258 = vmatpush1.msra.mxu0 0.0
        %259 = vmatprep.subr.mxu0 0.0
        %260 = vmatpush1.msra.mxu0 0.0
        %261 = vmatprep.subr.mxu0 0.0
        %262 = vmatpush1.msra.mxu0 0.0
        %263 = vmatprep.subr.mxu0 0.0
        %264 = vmatpush1.msra.mxu0 0.0
        %265 = vmatprep.subr.mxu0 0.0
        %266 = vmatpush1.msra.mxu0 0.0
        %267 = vmatprep.subr.mxu0 0.0
        %268 = vmatpush1.msra.mxu0 0.0
        %269 = vmatprep.subr.mxu0 0.0
        %270 = vmatpush1.msra.mxu0 0.0
        %271 = vmatprep.subr.mxu0 0.0
        %272 = vmatpush1.msra.mxu0 0.0
        %273 = vmatprep.subr.mxu0 0.0
        %274 = vmatpush1.msra.mxu0 0.0
        %275 = vmatprep.subr.mxu0 0.0
        %276 = vmatpush1.msra.mxu0 0.0
        %277 = vmatprep.subr.mxu0 0.0
        %278 = vmatpush1.msra.mxu0 0.0
        %279 = vmatprep.subr.mxu0 0.0
        %280 = vmatpush1.msra.mxu0 0.0
        %281 = vmatprep.subr.mxu0 0.0
        %282 = vmatpush1.msra.mxu0 0.0
        %283 = vmatprep.subr.mxu0 0.0
        %284 = vmatpush1.msra.mxu0 0.0
        %285 = vmatprep.subr.mxu0 0.0
        %286 = vmatpush1.msra.mxu0 0.0
        %287 = vmatprep.subr.mxu0 0.0
        %288 = vmatpush1.msra.mxu0 0.0
        %289 = vmatprep.subr.mxu0 0.0
        %290 = vmatpush1.msra.mxu0 0.0
        %291 = vmatprep.subr.mxu0 0.0
        %292 = vmatpush1.msra.mxu0 0.0
        %293 = vmatprep.subr.mxu0 0.0
        %294 = vmatpush1.msra.mxu0 0.0
        %295 = vmatprep.subr.mxu0 0.0
        %296 = vmatpush1.msra.mxu0 0.0
        %297 = vmatprep.subr.mxu0 0.0
        %298 = vmatpush1.msra.mxu0 0.0
        %299 = vmatprep.subr.mxu0 0.0
        %300 = vmatpush1.msra.mxu0 0.0
        %301 = vmatprep.subr.mxu0 0.0
        %302 = vmatpush1.msra.mxu0 0.0
        %303 = vmatprep.subr.mxu0 0.0
        %304 = vmatpush1.msra.mxu0 0.0
        %305 = vmatprep.subr.mxu0 0.0
        %306 = vmatpush1.msra.mxu0 0.0
        %307 = vmatprep.mubr.f32.mxu0 0.0
        %308 = vmatmul.mubr.f32.gmra.mrb[0].mxu0 %v241
        %v309 = vpop.f32.mrb[0].mxu0
        %v310 = vadd.f32 0.0, %v309
        %v311 = vpop.f32.mrb[0].mxu0
        %312 = vdwg.mxu0
        %v314 = vsel %vm239, %v236, 0
        %316 = vmatprep.subr.mxu0 0.0
        %317 = vmatpush1.msra.mxu0 %v221
        %318 = vmatprep.subr.mxu0 0.0
        %319 = vmatpush1.msra.mxu0 0.0
        %320 = vmatprep.subr.mxu0 0.0
        %321 = vmatpush1.msra.mxu0 0.0
        %322 = vmatprep.subr.mxu0 0.0
        %323 = vmatpush1.msra.mxu0 0.0
        %324 = vmatprep.subr.mxu0 0.0
        %325 = vmatpush1.msra.mxu0 0.0
        %326 = vmatprep.subr.mxu0 0.0
        %327 = vmatpush1.msra.mxu0 0.0
        %328 = vmatprep.subr.mxu0 0.0
        %329 = vmatpush1.msra.mxu0 0.0
        %330 = vmatprep.subr.mxu0 0.0
        %331 = vmatpush1.msra.mxu0 0.0
        %332 = vmatprep.subr.mxu0 0.0
        %333 = vmatpush1.msra.mxu0 0.0
        %334 = vmatprep.subr.mxu0 0.0
        %335 = vmatpush1.msra.mxu0 0.0
        %336 = vmatprep.subr.mxu0 0.0
        %337 = vmatpush1.msra.mxu0 0.0
        %338 = vmatprep.subr.mxu0 0.0
        %339 = vmatpush1.msra.mxu0 0.0
        %340 = vmatprep.subr.mxu0 0.0
        %341 = vmatpush1.msra.mxu0 0.0
        %342 = vmatprep.subr.mxu0 0.0
        %343 = vmatpush1.msra.mxu0 0.0
        %344 = vmatprep.subr.mxu0 0.0
        %345 = vmatpush1.msra.mxu0 0.0
        %346 = vmatprep.subr.mxu0 0.0
        %347 = vmatpush1.msra.mxu0 0.0
        %348 = vmatprep.subr.mxu0 0.0
        %349 = vmatpush1.msra.mxu0 0.0
        %350 = vmatprep.subr.mxu0 0.0
        %351 = vmatpush1.msra.mxu0 0.0
        %352 = vmatprep.subr.mxu0 0.0
        %353 = vmatpush1.msra.mxu0 0.0
        %354 = vmatprep.subr.mxu0 0.0
        %355 = vmatpush1.msra.mxu0 0.0
        %356 = vmatprep.subr.mxu0 0.0
        %357 = vmatpush1.msra.mxu0 0.0
        %358 = vmatprep.subr.mxu0 0.0
        %359 = vmatpush1.msra.mxu0 0.0
        %360 = vmatprep.subr.mxu0 0.0
        %361 = vmatpush1.msra.mxu0 0.0
        %362 = vmatprep.subr.mxu0 0.0
        %363 = vmatpush1.msra.mxu0 0.0
        %364 = vmatprep.subr.mxu0 0.0
        %365 = vmatpush1.msra.mxu0 0.0
        %366 = vmatprep.subr.mxu0 0.0
        %367 = vmatpush1.msra.mxu0 0.0
        %368 = vmatprep.subr.mxu0 0.0
        %369 = vmatpush1.msra.mxu0 0.0
        %370 = vmatprep.subr.mxu0 0.0
        %371 = vmatpush1.msra.mxu0 0.0
        %372 = vmatprep.subr.mxu0 0.0
        %373 = vmatpush1.msra.mxu0 0.0
        %374 = vmatprep.subr.mxu0 0.0
        %375 = vmatpush1.msra.mxu0 0.0
        %376 = vmatprep.subr.mxu0 0.0
        %377 = vmatpush1.msra.mxu0 0.0
        %378 = vmatprep.subr.mxu0 0.0
        %379 = vmatpush1.msra.mxu0 0.0
        %380 = vmatprep.mubr.f32.mxu0 0.0
        %381 = vmatmul.mubr.f32.gmra.mrb[0].mxu0 %v314
        %v382 = vpop.f32.mrb[0].mxu0
        %v383 = vadd.f32 %v310, %v382
        %v384 = vpop.f32.mrb[0].mxu0
        %385 = vdwg.mxu0
        %s386 = scalar_lea.vmem [#allocation5], 16
        %v387 = vld [vmem:[%s386] sm:$0xff]
        %v389 = vsel %vm239, %v387, 0
        %391 = vmatprep.subr.mxu0 0.0
        %392 = vmatpush1.msra.mxu0 %v231
        %393 = vmatprep.subr.mxu0 0.0
        %394 = vmatpush1.msra.mxu0 0.0
        %395 = vmatprep.subr.mxu0 0.0
        %396 = vmatpush1.msra.mxu0 0.0
        %397 = vmatprep.subr.mxu0 0.0
        %398 = vmatpush1.msra.mxu0 0.0
        %399 = vmatprep.subr.mxu0 0.0
        %400 = vmatpush1.msra.mxu0 0.0
        %401 = vmatprep.subr.mxu0 0.0
        %402 = vmatpush1.msra.mxu0 0.0
        %403 = vmatprep.subr.mxu0 0.0
        %404 = vmatpush1.msra.mxu0 0.0
        %405 = vmatprep.subr.mxu0 0.0
        %406 = vmatpush1.msra.mxu0 0.0
        %407 = vmatprep.subr.mxu0 0.0
        %408 = vmatpush1.msra.mxu0 0.0
        %409 = vmatprep.subr.mxu0 0.0
        %410 = vmatpush1.msra.mxu0 0.0
        %411 = vmatprep.subr.mxu0 0.0
        %412 = vmatpush1.msra.mxu0 0.0
        %413 = vmatprep.subr.mxu0 0.0
        %414 = vmatpush1.msra.mxu0 0.0
        %415 = vmatprep.subr.mxu0 0.0
        %416 = vmatpush1.msra.mxu0 0.0
        %417 = vmatprep.subr.mxu0 0.0
        %418 = vmatpush1.msra.mxu0 0.0
        %419 = vmatprep.subr.mxu0 0.0
        %420 = vmatpush1.msra.mxu0 0.0
        %421 = vmatprep.subr.mxu0 0.0
        %422 = vmatpush1.msra.mxu0 0.0
        %423 = vmatprep.subr.mxu0 0.0
        %424 = vmatpush1.msra.mxu0 0.0
        %425 = vmatprep.subr.mxu0 0.0
        %426 = vmatpush1.msra.mxu0 0.0
        %427 = vmatprep.subr.mxu0 0.0
        %428 = vmatpush1.msra.mxu0 0.0
        %429 = vmatprep.subr.mxu0 0.0
        %430 = vmatpush1.msra.mxu0 0.0
        %431 = vmatprep.subr.mxu0 0.0
        %432 = vmatpush1.msra.mxu0 0.0
        %433 = vmatprep.subr.mxu0 0.0
        %434 = vmatpush1.msra.mxu0 0.0
        %435 = vmatprep.subr.mxu0 0.0
        %436 = vmatpush1.msra.mxu0 0.0
        %437 = vmatprep.subr.mxu0 0.0
        %438 = vmatpush1.msra.mxu0 0.0
        %439 = vmatprep.subr.mxu0 0.0
        %440 = vmatpush1.msra.mxu0 0.0
        %441 = vmatprep.subr.mxu0 0.0
        %442 = vmatpush1.msra.mxu0 0.0
        %443 = vmatprep.subr.mxu0 0.0
        %444 = vmatpush1.msra.mxu0 0.0
        %445 = vmatprep.subr.mxu0 0.0
        %446 = vmatpush1.msra.mxu0 0.0
        %447 = vmatprep.subr.mxu0 0.0
        %448 = vmatpush1.msra.mxu0 0.0
        %449 = vmatprep.subr.mxu0 0.0
        %450 = vmatpush1.msra.mxu0 0.0
        %451 = vmatprep.subr.mxu0 0.0
        %452 = vmatpush1.msra.mxu0 0.0
        %453 = vmatprep.subr.mxu0 0.0
        %454 = vmatpush1.msra.mxu0 0.0
        %455 = vmatprep.mubr.f32.mxu0 0.0
        %456 = vmatmul.mubr.f32.gmra.mrb[0].mxu0 %v389
        %v457 = vpop.f32.mrb[0].mxu0
        %v458 = vadd.f32 0.0, %v457
        %v459 = vpop.f32.mrb[0].mxu0
        %460 = vdwg.mxu0
        %v461 = vadd.f32 %v383, %v458
        %s462 = scalar_lea.vmem [#allocation5], 24
        %v463 = vld [vmem:[%s462] sm:$0xff]
        %v465 = vsel %vm239, %v463, 0
        %467 = vmatprep.subr.mxu0 0.0
        %468 = vmatpush1.msra.mxu0 %v233
        %469 = vmatprep.subr.mxu0 0.0
        %470 = vmatpush1.msra.mxu0 0.0
        %471 = vmatprep.subr.mxu0 0.0
        %472 = vmatpush1.msra.mxu0 0.0
        %473 = vmatprep.subr.mxu0 0.0
        %474 = vmatpush1.msra.mxu0 0.0
        %475 = vmatprep.subr.mxu0 0.0
        %476 = vmatpush1.msra.mxu0 0.0
        %477 = vmatprep.subr.mxu0 0.0
        %478 = vmatpush1.msra.mxu0 0.0
        %479 = vmatprep.subr.mxu0 0.0
        %480 = vmatpush1.msra.mxu0 0.0
        %481 = vmatprep.subr.mxu0 0.0
        %482 = vmatpush1.msra.mxu0 0.0
        %483 = vmatprep.subr.mxu0 0.0
        %484 = vmatpush1.msra.mxu0 0.0
        %485 = vmatprep.subr.mxu0 0.0
        %486 = vmatpush1.msra.mxu0 0.0
        %487 = vmatprep.subr.mxu0 0.0
        %488 = vmatpush1.msra.mxu0 0.0
        %489 = vmatprep.subr.mxu0 0.0
        %490 = vmatpush1.msra.mxu0 0.0
        %491 = vmatprep.subr.mxu0 0.0
        %492 = vmatpush1.msra.mxu0 0.0
        %493 = vmatprep.subr.mxu0 0.0
        %494 = vmatpush1.msra.mxu0 0.0
        %495 = vmatprep.subr.mxu0 0.0
        %496 = vmatpush1.msra.mxu0 0.0
        %497 = vmatprep.subr.mxu0 0.0
        %498 = vmatpush1.msra.mxu0 0.0
        %499 = vmatprep.subr.mxu0 0.0
        %500 = vmatpush1.msra.mxu0 0.0
        %501 = vmatprep.subr.mxu0 0.0
        %502 = vmatpush1.msra.mxu0 0.0
        %503 = vmatprep.subr.mxu0 0.0
        %504 = vmatpush1.msra.mxu0 0.0
        %505 = vmatprep.subr.mxu0 0.0
        %506 = vmatpush1.msra.mxu0 0.0
        %507 = vmatprep.subr.mxu0 0.0
        %508 = vmatpush1.msra.mxu0 0.0
        %509 = vmatprep.subr.mxu0 0.0
        %510 = vmatpush1.msra.mxu0 0.0
        %511 = vmatprep.subr.mxu0 0.0
        %512 = vmatpush1.msra.mxu0 0.0
        %513 = vmatprep.subr.mxu0 0.0
        %514 = vmatpush1.msra.mxu0 0.0
        %515 = vmatprep.subr.mxu0 0.0
        %516 = vmatpush1.msra.mxu0 0.0
        %517 = vmatprep.subr.mxu0 0.0
        %518 = vmatpush1.msra.mxu0 0.0
        %519 = vmatprep.subr.mxu0 0.0
        %520 = vmatpush1.msra.mxu0 0.0
        %521 = vmatprep.subr.mxu0 0.0
        %522 = vmatpush1.msra.mxu0 0.0
        %523 = vmatprep.subr.mxu0 0.0
        %524 = vmatpush1.msra.mxu0 0.0
        %525 = vmatprep.subr.mxu0 0.0
        %526 = vmatpush1.msra.mxu0 0.0
        %527 = vmatprep.subr.mxu0 0.0
        %528 = vmatpush1.msra.mxu0 0.0
        %529 = vmatprep.subr.mxu0 0.0
        %530 = vmatpush1.msra.mxu0 0.0
        %531 = vmatprep.mubr.f32.mxu0 0.0
        %532 = vmatmul.mubr.f32.gmra.mrb[0].mxu0 %v465
        %v533 = vpop.f32.mrb[0].mxu0
        %v534 = vadd.f32 0.0, %v533
        %v535 = vpop.f32.mrb[0].mxu0
        %536 = vdwg.mxu0
        %v537 = vadd.f32 %v461, %v534
        %s538 = scalar_lea.vmem [#allocation5], 32
        %v539 = vld [vmem:[%s538] sm:$0xff]
        %v541 = vsel %vm239, %v539, 0
        %543 = vmatprep.subr.mxu0 0.0
        %544 = vmatpush1.msra.mxu0 %v235
        %545 = vmatprep.subr.mxu0 0.0
        %546 = vmatpush1.msra.mxu0 0.0
        %547 = vmatprep.subr.mxu0 0.0
        %548 = vmatpush1.msra.mxu0 0.0
        %549 = vmatprep.subr.mxu0 0.0
        %550 = vmatpush1.msra.mxu0 0.0
        %551 = vmatprep.subr.mxu0 0.0
        %552 = vmatpush1.msra.mxu0 0.0
        %553 = vmatprep.subr.mxu0 0.0
        %554 = vmatpush1.msra.mxu0 0.0
        %555 = vmatprep.subr.mxu0 0.0
        %556 = vmatpush1.msra.mxu0 0.0
        %557 = vmatprep.subr.mxu0 0.0
        %558 = vmatpush1.msra.mxu0 0.0
        %559 = vmatprep.subr.mxu0 0.0
        %560 = vmatpush1.msra.mxu0 0.0
        %561 = vmatprep.subr.mxu0 0.0
        %562 = vmatpush1.msra.mxu0 0.0
        %563 = vmatprep.subr.mxu0 0.0
        %564 = vmatpush1.msra.mxu0 0.0
        %565 = vmatprep.subr.mxu0 0.0
        %566 = vmatpush1.msra.mxu0 0.0
        %567 = vmatprep.subr.mxu0 0.0
        %568 = vmatpush1.msra.mxu0 0.0
        %569 = vmatprep.subr.mxu0 0.0
        %570 = vmatpush1.msra.mxu0 0.0
        %571 = vmatprep.subr.mxu0 0.0
        %572 = vmatpush1.msra.mxu0 0.0
        %573 = vmatprep.subr.mxu0 0.0
        %574 = vmatpush1.msra.mxu0 0.0
        %575 = vmatprep.subr.mxu0 0.0
        %576 = vmatpush1.msra.mxu0 0.0
        %577 = vmatprep.subr.mxu0 0.0
        %578 = vmatpush1.msra.mxu0 0.0
        %579 = vmatprep.subr.mxu0 0.0
        %580 = vmatpush1.msra.mxu0 0.0
        %581 = vmatprep.subr.mxu0 0.0
        %582 = vmatpush1.msra.mxu0 0.0
        %583 = vmatprep.subr.mxu0 0.0
        %584 = vmatpush1.msra.mxu0 0.0
        %585 = vmatprep.subr.mxu0 0.0
        %586 = vmatpush1.msra.mxu0 0.0
        %587 = vmatprep.subr.mxu0 0.0
        %588 = vmatpush1.msra.mxu0 0.0
        %589 = vmatprep.subr.mxu0 0.0
        %590 = vmatpush1.msra.mxu0 0.0
        %591 = vmatprep.subr.mxu0 0.0
        %592 = vmatpush1.msra.mxu0 0.0
        %593 = vmatprep.subr.mxu0 0.0
        %594 = vmatpush1.msra.mxu0 0.0
        %595 = vmatprep.subr.mxu0 0.0
        %596 = vmatpush1.msra.mxu0 0.0
        %597 = vmatprep.subr.mxu0 0.0
        %598 = vmatpush1.msra.mxu0 0.0
        %599 = vmatprep.subr.mxu0 0.0
        %600 = vmatpush1.msra.mxu0 0.0
        %601 = vmatprep.subr.mxu0 0.0
        %602 = vmatpush1.msra.mxu0 0.0
        %603 = vmatprep.subr.mxu0 0.0
        %604 = vmatpush1.msra.mxu0 0.0
        %605 = vmatprep.subr.mxu0 0.0
        %606 = vmatpush1.msra.mxu0 0.0
        %607 = vmatprep.mubr.f32.mxu0 0.0
        %608 = vmatmul.mubr.f32.gmra.mrb[0].mxu0 %v541
        %v609 = vpop.f32.mrb[0].mxu0
        %v610 = vadd.f32 0.0, %v609
        %v611 = vpop.f32.mrb[0].mxu0
        %612 = vdwg.mxu0
        %v613 = vadd.f32 %v537, %v610
        %v614 = vld [vmem:[%s2] sm:$0xff]
        %616 = vset.pattern.permute.xlu0 0
        %617 = vperm.xlu0 %616, %v614
        %v618 = vpop.permute.xlu0 %617
        %v620 = vadd.f32 %v613, %v618
        %621 = vst [vmem:[%s220] sm:$0xff] %v620
        %s622 = sand.u32 %s113, 1
        %s623 = scalar_lea.sflag [#allocation4], %s622
        %s624 = sand.u32 %s113, 1
        %s625 = smul.addr %s624, 8
        %s626 = scalar_lea.vmem [#allocation7], %s625
        // Predicated region
        $region41: #{tpu_custom_call.1} parent=31 // pred_check
          %p627 = pneg %p123
        $region42: #{tpu_custom_call.1} parent=31 // pred_check_branch
          %629 = sbr.rel (%p627) target = $region44
        $region43: #{tpu_custom_call.1} parent=31 // pred_region
          %s631 = ssub.s32 128, 128
          %632 = vsyncadd %s623, %s631
          %s633 = sadd.s32 %s26, %s25
          %s634 = smul.addr %s633, 128
          %s635 = scalar_lea.hbm %s3, %s634
          %s637 = sshll.u32 %s626, 4
          %s638 = int_to_ptr.vmem [resolvable:$true] %s637
          %640 = dma.vmem_to_hbm [thread:$0]  %s638, 128, %s635, %s623
        $region44: #{tpu_custom_call.1} parent=31 // pred_fallthru
          _
      $region32: #{tpu_custom_call.1} parent=5 // pred_fallthru
        _
      %p641 = scmp.le.s32.totalorder 2, %s16
      // Predicated region
      $region45: #{tpu_custom_call.1} parent=5 // pred_check
        %p642 = pneg %p641
      $region46: #{tpu_custom_call.1} parent=5 // pred_check_branch
        %644 = sbr.rel (%p642) target = $region48
      $region47: #{tpu_custom_call.1} parent=5 // pred_region
        %s645 = ssub.s32 %s16, 2
        // Predicated region
        $region49: #{tpu_custom_call.1} parent=47 // pred_check
          %p646 = pneg %p129
        $region50: #{tpu_custom_call.1} parent=47 // pred_check_branch
          %648 = sbr.rel (%p646) target = $region52
        $region51: #{tpu_custom_call.1} parent=47 // pred_region
          %s649 = sand.u32 %s114, 1
          %s650 = scalar_lea.sflag [#allocation4], %s649
          %s651 = sand.u32 %s114, 1
          %s652 = smul.addr %s651, 8
          %s653 = scalar_lea.vmem [#allocation7], %s652
          %654 = dma.done %s650, 128
        $region52: #{tpu_custom_call.1} parent=47 // pred_fallthru
          _
      $region48: #{tpu_custom_call.1} parent=5 // pred_fallthru
        _
    $region6: #{tpu_custom_call.1} parent=1 // loop_footer
      %s20 = sadd.s32 1, %s16
    $region7: #{tpu_custom_call.1} parent=1 // loop_footer_branch
      %15 = sbr.rel target = $region3
    $region8: #{tpu_custom_call.1} parent=1 // loop_exit
      _
    %655 = vsyncpa [#allocation3], 1
    %s656 = scalar_lea.sflag [#allocation3], 1
    %657 = vsyncpa %s656, 1
    %658 = vsyncpa [#allocation6], 1
    %659 = vsyncpa [#allocation4], 1
    %s660 = scalar_lea.sflag [#allocation4], 1
    %661 = vsyncpa %s660, 1

</llo_original>
